<compile_context>
chip_gen: v5e
topology: v5e:2x2
jax: 0.10.0
libtpu: 0.0.40
codegen_flags: <defaults>
</compile_context>

<pallas_src>
import functools
import math

import jax
import jax.numpy as jnp
from jax import lax
from jax.experimental import pallas as pl
from jax.experimental.pallas import tpu as pltpu


def _layernorm(v, w, b, eps=1e-5):
    # one-pass statistics: mean and mean-of-squares in the same sweep
    mu = jnp.mean(v, axis=-1, keepdims=True)
    msq = jnp.mean(v * v, axis=-1, keepdims=True)
    var = jnp.maximum(msq - mu * mu, 0.0)
    return (v - mu) * lax.rsqrt(var + eps) * w + b


def _encoder_stack_kernel(x_ref, wqkv_ref, bqkv_ref, wo_ref, bo_ref,
                          w1_ref, b1_ref, w2_ref, b2_ref,
                          n1w_ref, n1b_ref, n2w_ref, n2b_ref,
                          fnw_ref, fnb_ref, o_ref, x_scr, *, nhead):
    layer = pl.program_id(1)
    num_layers = pl.num_programs(1)
    Bt, S, D = x_ref.shape
    M = Bt * S
    hd = D // nhead
    bf16 = jnp.bfloat16

    @pl.when(layer == 0)
    def _():
        x_scr[...] = x_ref[...].reshape(M, D)     # load residual stream for this batch block

    x = x_scr[...]                                # (M, D) f32 residual stream

    # ---- pre-norm 1 + fused-QKV multi-head self-attention ----
    xn = _layernorm(x, n1w_ref[...], n1b_ref[...])
    # wqkv columns are head-major [q_h | k_h | v_h]; q already carries the 1/sqrt(hd) scale.
    # Single f32 -> bf16 cast right after the bias add.
    qkv = (jnp.dot(xn.astype(bf16), wqkv_ref[...],
                   preferred_element_type=jnp.float32) + bqkv_ref[...]).astype(bf16)  # (M, 3D)

    # Head split: ONE slice of width 3*hd per head (lane-aligned when hd % 128 == 0),
    # stacked into a single (H*Bt, S, 3*hd) attention batch.
    qkvh = jnp.stack(
        [qkv[:, h * 3 * hd:(h + 1) * 3 * hd].reshape(Bt, S, 3 * hd) for h in range(nhead)],
        axis=0).reshape(nhead * Bt, S, 3 * hd)
    q = qkvh[..., :hd]
    k = qkvh[..., hd:2 * hd]
    v = qkvh[..., 2 * hd:]

    # TODO(synk): for long sequences replace this (H*Bt, S, S) materialization with an inner
    #             KV axis + online-softmax (flash-style) accumulators.
    logits = jnp.einsum('bqd,bkd->bqk', q, k,
                        preferred_element_type=jnp.float32)            # (H*Bt, S, S) f32
    logits = logits - jnp.max(logits, axis=-1, keepdims=True)
    p = jnp.exp(logits)
    p = p * pl.reciprocal(jnp.sum(p, axis=-1, keepdims=True), approx=True)
    ctx = jnp.einsum('bqk,bkd->bqd', p.astype(bf16), v,
                     preferred_element_type=jnp.float32).astype(bf16)  # (H*Bt, S, hd)

    # Merge heads back to (M, D) and run ONE K=D output projection on the MXU.
    ctx = ctx.reshape(nhead, Bt, S, hd)
    ctx = jnp.concatenate([ctx[h] for h in range(nhead)], axis=-1).reshape(M, D)
    attn = jnp.dot(ctx, wo_ref[...], preferred_element_type=jnp.float32) + bo_ref[...]
    x = x + attn                                   # dropout1 = identity (inference)

    # ---- pre-norm 2 + position-wise feed-forward ----
    xn = _layernorm(x, n2w_ref[...], n2b_ref[...])
    h1 = jnp.maximum(jnp.dot(xn.astype(bf16), w1_ref[...],
                             preferred_element_type=jnp.float32) + b1_ref[...], 0.0)
    ff = jnp.dot(h1.astype(bf16), w2_ref[...],
                 preferred_element_type=jnp.float32) + b2_ref[...]
    x = x + ff                                     # dropout / dropout2 = identity

    x_scr[...] = x                                 # carry residual stream to next layer

    @pl.when(layer == num_layers - 1)
    def _():
        o_ref[...] = _layernorm(x, fnw_ref[...], fnb_ref[...]).reshape(Bt, S, D)


def init_params(key, d_model, nhead, num_layers, dim_feedforward):
    """Parameters matching the PyTorch module's shapes, stacked over layers, pre-transposed
    to (in, out) matmul layout, with the q-scale folded into wqkv/bqkv and the fused QKV
    columns permuted head-major so the kernel needs one slice per head."""
    hd = d_model // nhead
    scale = 1.0 / math.sqrt(hd)
    perm = jnp.array([which * d_model + h * hd + i
                      for h in range(nhead) for which in range(3) for i in range(hd)],
                     dtype=jnp.int32)

    def dense(k, out_dim, in_dim):
        bound = 1.0 / math.sqrt(in_dim)
        kw, kb = jax.random.split(k)
        w = jax.random.uniform(kw, (out_dim, in_dim), jnp.float32, -bound, bound)
        b = jax.random.uniform(kb, (out_dim,), jnp.float32, -bound, bound)
        return w, b

    keys = jax.random.split(key, num_layers)
    acc = {name: [] for name in
           ('wqkv', 'bqkv', 'wo', 'bo', 'w1', 'b1', 'w2', 'b2',
            'n1w', 'n1b', 'n2w', 'n2b')}
    for i in range(num_layers):
        k = jax.random.split(keys[i], 4)
        ipw, ipb = dense(k[0], 3 * d_model, d_model)   # MultiheadAttention in_proj
        opw, opb = dense(k[1], d_model, d_model)       # out_proj
        l1w, l1b = dense(k[2], dim_feedforward, d_model)
        l2w, l2b = dense(k[3], d_model, dim_feedforward)
        wqkv = ipw.T.at[:, :d_model].multiply(scale)   # fold 1/sqrt(hd) into q columns
        bqkv = ipb.at[:d_model].multiply(scale)
        acc['wqkv'].append(wqkv[:, perm])                             # (D, 3D) head-major cols
        acc['bqkv'].append(bqkv[perm].reshape(1, -1))                 # (1, 3D)
        acc['wo'].append(opw.T)                                       # (D, D)
        acc['bo'].append(opb.reshape(1, -1))                          # (1, D)
        acc['w1'].append(l1w.T)                                       # (D, F)
        acc['b1'].append(l1b.reshape(1, -1))                          # (1, F)
        acc['w2'].append(l2w.T)                                       # (F, D)
        acc['b2'].append(l2b.reshape(1, -1))                          # (1, D)
        acc['n1w'].append(jnp.ones((1, d_model), jnp.float32))
        acc['n1b'].append(jnp.zeros((1, d_model), jnp.float32))
        acc['n2w'].append(jnp.ones((1, d_model), jnp.float32))
        acc['n2b'].append(jnp.zeros((1, d_model), jnp.float32))

    params = {name: jnp.stack(vals) for name, vals in acc.items()}
    for name in ('wqkv', 'wo', 'w1', 'w2'):
        params[name] = params[name].astype(jnp.bfloat16)              # MXU inputs in bf16
    params['fnw'] = jnp.ones((1, d_model), jnp.float32)
    params['fnb'] = jnp.zeros((1, d_model), jnp.float32)
    return params


def _pick_batch_tile(B, S, D, act_budget_bytes=4 << 20):
    """Largest batch tile that divides B, keeps the activation block modest, and (when
    possible) leaves >= 2 steps on the parallel grid axis so both v7x TCs are busy
    (perf-neutral on single-TC v5e/v6e)."""
    divisors = [d for d in range(1, B + 1) if B % d == 0]
    fits = [d for d in divisors if d * S * D * 4 <= act_budget_bytes] or [1]
    pref = [d for d in fits if B // d >= 2]
    return max(pref) if pref else max(fits)


def _vmem_limit_bytes():
    """~80% of physical VMEM: ~51 MiB on v7x (64 MiB/TC), ~102 MiB on v5e/v6e (128 MiB)."""
    try:
        cap = pltpu.get_tpu_info().vmem_capacity_bytes
        return int(min(max(cap * 0.8, 32 * 1024 * 1024), 112 * 1024 * 1024))
    except Exception:
        return 48 * 1024 * 1024


@functools.partial(jax.jit, static_argnames=("nhead", "batch_tile"))
def transformer_encoder(src, params, *, nhead, batch_tile=None):
    """src: (seq_len, batch, d_model) — same convention as the PyTorch module."""
    S, B, D = src.shape
    L, _, F = params['w1'].shape
    assert D % nhead == 0
    x = jnp.transpose(src, (1, 0, 2)).astype(jnp.float32)            # -> (B, S, D)

    Bt = batch_tile if batch_tile is not None else _pick_batch_tile(B, S, D)
    assert B % Bt == 0

    def per_layer(shape):
        zeros = (0,) * len(shape)
        return pl.BlockSpec((None,) + shape, lambda b, l: (l,) + zeros)

    # TODO(synk): for real model sizes pad d_model / dim_feedforward to multiples of 128 in
    #             the wrapper (lane-dense stores) and tile the FFN F dim on v7x (64 MiB VMEM).
    in_specs = [
        pl.BlockSpec((Bt, S, D), lambda b, l: (b, 0, 0)),            # x (batch-tiled)
        per_layer((D, 3 * D)),                                       # wqkv (bf16)
        per_layer((1, 3 * D)),                                       # bqkv
        per_layer((D, D)),                                           # wo (bf16)
        per_layer((1, D)),                                           # bo
        per_layer((D, F)), per_layer((1, F)),                        # w1, b1
        per_layer((F, D)), per_layer((1, D)),                        # w2, b2
        per_layer((1, D)), per_layer((1, D)),                        # norm1 w, b
        per_layer((1, D)), per_layer((1, D)),                        # norm2 w, b
        pl.BlockSpec((1, D), lambda b, l: (0, 0)),                   # final norm w
        pl.BlockSpec((1, D), lambda b, l: (0, 0)),                   # final norm b
    ]

    out = pl.pallas_call(
        functools.partial(_encoder_stack_kernel, nhead=nhead),
        out_shape=jax.ShapeDtypeStruct((B, S, D), jnp.float32),
        grid_spec=pltpu.PrefetchScalarGridSpec(
            num_scalar_prefetch=0,
            grid=(B // Bt, L),                                       # batch parallel, layers sequential
            in_specs=in_specs,
            out_specs=pl.BlockSpec((Bt, S, D), lambda b, l: (b, 0, 0)),
            scratch_shapes=[pltpu.VMEM((Bt * S, D), jnp.float32)]),  # residual-stream carry
        compiler_params=pltpu.CompilerParams(
            dimension_semantics=("parallel", "arbitrary"),
            vmem_limit_bytes=_vmem_limit_bytes()),
        input_output_aliases={0: 0},                                 # donate activation buffer
    )(x, params['wqkv'], params['bqkv'], params['wo'], params['bo'],
      params['w1'], params['b1'], params['w2'], params['b2'],
      params['n1w'], params['n1b'], params['n2w'], params['n2b'],
      params['fnw'], params['fnb'])

    return jnp.transpose(out, (1, 0, 2))                             # back to (S, B, D)


if __name__ == "__main__":
    # TODO(synk): src_mask / src_key_padding_mask paths not implemented (None in this config).
    d_model, nhead, num_layers, dim_ff = 32, 4, 2, 64
    seq_len, batch = 8, 2

    key = jax.random.PRNGKey(0)
    k_param, k_in = jax.random.split(key)
    params = init_params(k_param, d_model, nhead, num_layers, dim_ff)

    src = jax.random.normal(k_in, (seq_len, batch, d_model), jnp.float32)
    out = transformer_encoder(src, params, nhead=nhead)
    out = jax.block_until_ready(out)
    assert out.shape == (seq_len, batch, d_model)
    assert bool(jnp.all(jnp.isfinite(out)))
    print("KERNEL_OK")
</pallas_src>

<mosaic_0001>
module attributes {stable_mosaic.version = 11 : i64} {
  func.func @_encoder_stack_kernel(%arg0: i32, %arg1: i32, %arg2: memref<1x8x32xf32, #tpu.memory_space<vmem>>, %arg3: memref<1x32x96xbf16, #tpu.memory_space<vmem>>, %arg4: memref<1x1x96xf32, #tpu.memory_space<vmem>>, %arg5: memref<1x32x32xbf16, #tpu.memory_space<vmem>>, %arg6: memref<1x1x32xf32, #tpu.memory_space<vmem>>, %arg7: memref<1x32x64xbf16, #tpu.memory_space<vmem>>, %arg8: memref<1x1x64xf32, #tpu.memory_space<vmem>>, %arg9: memref<1x64x32xbf16, #tpu.memory_space<vmem>>, %arg10: memref<1x1x32xf32, #tpu.memory_space<vmem>>, %arg11: memref<1x1x32xf32, #tpu.memory_space<vmem>>, %arg12: memref<1x1x32xf32, #tpu.memory_space<vmem>>, %arg13: memref<1x1x32xf32, #tpu.memory_space<vmem>>, %arg14: memref<1x1x32xf32, #tpu.memory_space<vmem>>, %arg15: memref<1x32xf32, #tpu.memory_space<vmem>>, %arg16: memref<1x32xf32, #tpu.memory_space<vmem>>, %arg17: memref<1x8x32xf32, #tpu.memory_space<vmem>>, %arg18: memref<8x32xf32, #tpu.memory_space<vmem>>) attributes {dimension_semantics = [#tpu.dimension_semantics<parallel>, #tpu.dimension_semantics<arbitrary>], iteration_bounds = array<i64: 2, 2>, scalar_prefetch = 0 : i64, scratch_operands = 1 : i64, tpu.core_type = #tpu.core_type<tc>, window_params = [{transform_indices = @transform_0, window_bounds = array<i64: 1, 8, 32>}, {transform_indices = @transform_1, window_bounds = array<i64: 1, 32, 96>}, {transform_indices = @transform_2, window_bounds = array<i64: 1, 1, 96>}, {transform_indices = @transform_3, window_bounds = array<i64: 1, 32, 32>}, {transform_indices = @transform_4, window_bounds = array<i64: 1, 1, 32>}, {transform_indices = @transform_5, window_bounds = array<i64: 1, 32, 64>}, {transform_indices = @transform_6, window_bounds = array<i64: 1, 1, 64>}, {transform_indices = @transform_7, window_bounds = array<i64: 1, 64, 32>}, {transform_indices = @transform_8, window_bounds = array<i64: 1, 1, 32>}, {transform_indices = @transform_9, window_bounds = array<i64: 1, 1, 32>}, {transform_indices = @transform_10, window_bounds = array<i64: 1, 1, 32>}, {transform_indices = @transform_11, window_bounds = array<i64: 1, 1, 32>}, {transform_indices = @transform_12, window_bounds = array<i64: 1, 1, 32>}, {pipeline_mode = #tpu.pipeline_mode<synchronous>, transform_indices = @transform_13, window_bounds = array<i64: 1, 32>}, {pipeline_mode = #tpu.pipeline_mode<synchronous>, transform_indices = @transform_14, window_bounds = array<i64: 1, 32>}, {transform_indices = @transform_15, window_bounds = array<i64: 1, 8, 32>}]} {
    %c0_i32 = arith.constant 0 : i32
    %0 = arith.cmpi eq, %arg1, %c0_i32 : i32
    %1 = arith.extui %0 : i1 to i32
    %c0_i32_0 = arith.constant 0 : i32
    %2 = arith.cmpi ne, %1, %c0_i32_0 : i32
    scf.if %2 {
      %c0_61 = arith.constant 0 : index
      %c0_62 = arith.constant 0 : index
      %c0_63 = arith.constant 0 : index
      %142 = vector.load %arg2[%c0_61, %c0_62, %c0_63] : memref<1x8x32xf32, #tpu.memory_space<vmem>>, vector<1x8x32xf32>
      %143 = vector.shape_cast %142 : vector<1x8x32xf32> to vector<8x32xf32>
      %c0_64 = arith.constant 0 : index
      %c0_65 = arith.constant 0 : index
      %144 = vector.load %arg18[%c0_64, %c0_65] : memref<8x32xf32, #tpu.memory_space<vmem>>, vector<8x32xf32>
      tpu.vector_store %arg18[%c0_64, %c0_65], %143 {strides = array<i32>} : memref<8x32xf32, #tpu.memory_space<vmem>>, vector<8x32xf32>,
    } else {
    }
    %c0 = arith.constant 0 : index
    %c0_1 = arith.constant 0 : index
    %3 = vector.load %arg18[%c0, %c0_1] : memref<8x32xf32, #tpu.memory_space<vmem>>, vector<8x32xf32>
    %c0_2 = arith.constant 0 : index
    %c0_3 = arith.constant 0 : index
    %c0_4 = arith.constant 0 : index
    %4 = vector.load %arg11[%c0_2, %c0_3, %c0_4] : memref<1x1x32xf32, #tpu.memory_space<vmem>>, vector<1x1x32xf32>
    %5 = vector.shape_cast %4 : vector<1x1x32xf32> to vector<1x32xf32>
    %c0_5 = arith.constant 0 : index
    %c0_6 = arith.constant 0 : index
    %c0_7 = arith.constant 0 : index
    %6 = vector.load %arg12[%c0_5, %c0_6, %c0_7] : memref<1x1x32xf32, #tpu.memory_space<vmem>>, vector<1x1x32xf32>
    %7 = vector.shape_cast %6 : vector<1x1x32xf32> to vector<1x32xf32>
    %cst = arith.constant dense<0.000000e+00> : vector<8xf32>
    %8 = vector.multi_reduction <add>, %3, %cst [1] : vector<8x32xf32> to vector<8xf32>
    %9 = vector.shape_cast %8 : vector<8xf32> to vector<8x1xf32>
    %cst_8 = arith.constant 3.200000e+01 : f32
    %10 = vector.broadcast %cst_8 : f32 to vector<8x1xf32>
    %11 = arith.divf %9, %10 : vector<8x1xf32>
    %12 = arith.mulf %3, %3 : vector<8x32xf32>
    %cst_9 = arith.constant dense<0.000000e+00> : vector<8xf32>
    %13 = vector.multi_reduction <add>, %12, %cst_9 [1] : vector<8x32xf32> to vector<8xf32>
    %14 = vector.shape_cast %13 : vector<8xf32> to vector<8x1xf32>
    %cst_10 = arith.constant 3.200000e+01 : f32
    %15 = vector.broadcast %cst_10 : f32 to vector<8x1xf32>
    %16 = arith.divf %14, %15 : vector<8x1xf32>
    %17 = arith.mulf %11, %11 : vector<8x1xf32>
    %18 = arith.subf %16, %17 : vector<8x1xf32>
    %cst_11 = arith.constant 0.000000e+00 : f32
    %19 = vector.broadcast %cst_11 : f32 to vector<8x1xf32>
    %20 = arith.maximumf %18, %19 : vector<8x1xf32>
    %21 = vector.broadcast %11 : vector<8x1xf32> to vector<8x32xf32>
    %22 = arith.subf %3, %21 : vector<8x32xf32>
    %cst_12 = arith.constant 9.99999974E-6 : f32
    %23 = vector.broadcast %cst_12 : f32 to vector<8x1xf32>
    %24 = arith.addf %20, %23 : vector<8x1xf32>
    %25 = math.rsqrt %24 : vector<8x1xf32>
    %26 = vector.broadcast %25 : vector<8x1xf32> to vector<8x32xf32>
    %27 = arith.mulf %22, %26 : vector<8x32xf32>
    %28 = vector.broadcast %5 : vector<1x32xf32> to vector<8x32xf32>
    %29 = arith.mulf %27, %28 : vector<8x32xf32>
    %30 = vector.broadcast %7 : vector<1x32xf32> to vector<8x32xf32>
    %31 = arith.addf %29, %30 : vector<8x32xf32>
    %32 = arith.truncf %31 : vector<8x32xf32> to vector<8x32xbf16>
    %c0_13 = arith.constant 0 : index
    %c0_14 = arith.constant 0 : index
    %c0_15 = arith.constant 0 : index
    %33 = vector.load %arg3[%c0_13, %c0_14, %c0_15] : memref<1x32x96xbf16, #tpu.memory_space<vmem>>, vector<1x32x96xbf16>
    %34 = vector.shape_cast %33 : vector<1x32x96xbf16> to vector<32x96xbf16>
    %cst_16 = arith.constant dense<0.000000e+00> : vector<8x96xf32>
    %35 = tpu.matmul %32, %34, %cst_16 {dimension_numbers = #tpu.dot_dimension_numbers<[1], [0], [0], [1], [0, 0, 1, 1], [], []>} : vector<8x32xbf16>, vector<32x96xbf16>, vector<8x96xf32> -> vector<8x96xf32>
    %c0_17 = arith.constant 0 : index
    %c0_18 = arith.constant 0 : index
    %c0_19 = arith.constant 0 : index
    %36 = vector.load %arg4[%c0_17, %c0_18, %c0_19] : memref<1x1x96xf32, #tpu.memory_space<vmem>>, vector<1x1x96xf32>
    %37 = vector.shape_cast %36 : vector<1x1x96xf32> to vector<1x96xf32>
    %38 = vector.broadcast %37 : vector<1x96xf32> to vector<8x96xf32>
    %39 = arith.addf %35, %38 : vector<8x96xf32>
    %40 = arith.truncf %39 : vector<8x96xf32> to vector<8x96xbf16>
    %41 = vector.extract_strided_slice %40 {offsets = [0, 0], sizes = [8, 24], strides = [1, 1]} : vector<8x96xbf16> to vector<8x24xbf16>
    %42 = vector.shape_cast %41 : vector<8x24xbf16> to vector<1x8x24xbf16>
    %43 = vector.extract_strided_slice %40 {offsets = [0, 24], sizes = [8, 24], strides = [1, 1]} : vector<8x96xbf16> to vector<8x24xbf16>
    %44 = vector.shape_cast %43 : vector<8x24xbf16> to vector<1x8x24xbf16>
    %45 = vector.extract_strided_slice %40 {offsets = [0, 48], sizes = [8, 24], strides = [1, 1]} : vector<8x96xbf16> to vector<8x24xbf16>
    %46 = vector.shape_cast %45 : vector<8x24xbf16> to vector<1x8x24xbf16>
    %47 = vector.extract_strided_slice %40 {offsets = [0, 72], sizes = [8, 24], strides = [1, 1]} : vector<8x96xbf16> to vector<8x24xbf16>
    %48 = vector.shape_cast %47 : vector<8x24xbf16> to vector<1x8x24xbf16>
    %49 = vector.shape_cast %42 : vector<1x8x24xbf16> to vector<1x1x8x24xbf16>
    %50 = vector.shape_cast %44 : vector<1x8x24xbf16> to vector<1x1x8x24xbf16>
    %51 = vector.shape_cast %46 : vector<1x8x24xbf16> to vector<1x1x8x24xbf16>
    %52 = vector.shape_cast %48 : vector<1x8x24xbf16> to vector<1x1x8x24xbf16>
    %53 = tpu.concatenate %49, %50, %51, %52 in 0 : vector<1x1x8x24xbf16>, vector<1x1x8x24xbf16>, vector<1x1x8x24xbf16>, vector<1x1x8x24xbf16> -> vector<4x1x8x24xbf16>
    %54 = vector.shape_cast %53 : vector<4x1x8x24xbf16> to vector<4x8x24xbf16>
    %55 = vector.extract_strided_slice %54 {offsets = [0, 0, 0], sizes = [4, 8, 8], strides = [1, 1, 1]} : vector<4x8x24xbf16> to vector<4x8x8xbf16>
    %56 = vector.extract_strided_slice %54 {offsets = [0, 0, 8], sizes = [4, 8, 8], strides = [1, 1, 1]} : vector<4x8x24xbf16> to vector<4x8x8xbf16>
    %57 = vector.extract_strided_slice %54 {offsets = [0, 0, 16], sizes = [4, 8, 8], strides = [1, 1, 1]} : vector<4x8x24xbf16> to vector<4x8x8xbf16>
    "tpu.trace_start"() <{level = 10 : i32, message = "bqd,bkd->bqk"}> : () -> ()
    %cst_20 = arith.constant dense<0.000000e+00> : vector<4x8x8xf32>
    %58 = tpu.matmul %55, %56, %cst_20 {dimension_numbers = #tpu.dot_dimension_numbers<[2], [2], [1], [1], [0, 0, 0, 1, 1, 1], [0], [0]>} : vector<4x8x8xbf16>, vector<4x8x8xbf16>, vector<4x8x8xf32> -> vector<4x8x8xf32>
    "tpu.trace_stop"() : () -> ()
    %cst_21 = arith.constant dense<0xFF800000> : vector<4x8xf32>
    %59 = vector.multi_reduction <maximumf>, %58, %cst_21 [2] : vector<4x8x8xf32> to vector<4x8xf32>
    %60 = vector.shape_cast %59 : vector<4x8xf32> to vector<4x8x1xf32>
    %61 = vector.broadcast %60 : vector<4x8x1xf32> to vector<4x8x8xf32>
    %62 = arith.subf %58, %61 : vector<4x8x8xf32>
    %63 = math.exp %62 : vector<4x8x8xf32>
    %cst_22 = arith.constant dense<0.000000e+00> : vector<4x8xf32>
    %64 = vector.multi_reduction <add>, %63, %cst_22 [2] : vector<4x8x8xf32> to vector<4x8xf32>
    %65 = vector.shape_cast %64 : vector<4x8xf32> to vector<4x8x1xf32>
    %66 = tpu.reciprocal %65 {approx = true} : vector<4x8x1xf32> -> vector<4x8x1xf32>
    %67 = vector.broadcast %66 : vector<4x8x1xf32> to vector<4x8x8xf32>
    %68 = arith.mulf %63, %67 : vector<4x8x8xf32>
    %69 = arith.truncf %68 : vector<4x8x8xf32> to vector<4x8x8xbf16>
    "tpu.trace_start"() <{level = 10 : i32, message = "bqk,bkd->bqd"}> : () -> ()
    %cst_23 = arith.constant dense<0.000000e+00> : vector<4x8x8xf32>
    %70 = tpu.matmul %69, %57, %cst_23 {dimension_numbers = #tpu.dot_dimension_numbers<[2], [1], [1], [2], [0, 0, 0, 1, 1, 2], [0], [0]>} : vector<4x8x8xbf16>, vector<4x8x8xbf16>, vector<4x8x8xf32> -> vector<4x8x8xf32>
    "tpu.trace_stop"() : () -> ()
    %71 = arith.truncf %70 : vector<4x8x8xf32> to vector<4x8x8xbf16>
    %72 = vector.shape_cast %71 : vector<4x8x8xbf16> to vector<4x1x8x8xbf16>
    %73 = vector.extract_strided_slice %72 {offsets = [0, 0, 0, 0], sizes = [1, 1, 8, 8], strides = [1, 1, 1, 1]} : vector<4x1x8x8xbf16> to vector<1x1x8x8xbf16>
    %74 = vector.shape_cast %73 : vector<1x1x8x8xbf16> to vector<1x8x8xbf16>
    %75 = vector.extract_strided_slice %72 {offsets = [1, 0, 0, 0], sizes = [1, 1, 8, 8], strides = [1, 1, 1, 1]} : vector<4x1x8x8xbf16> to vector<1x1x8x8xbf16>
    %76 = vector.shape_cast %75 : vector<1x1x8x8xbf16> to vector<1x8x8xbf16>
    %77 = vector.extract_strided_slice %72 {offsets = [2, 0, 0, 0], sizes = [1, 1, 8, 8], strides = [1, 1, 1, 1]} : vector<4x1x8x8xbf16> to vector<1x1x8x8xbf16>
    %78 = vector.shape_cast %77 : vector<1x1x8x8xbf16> to vector<1x8x8xbf16>
    %79 = vector.extract_strided_slice %72 {offsets = [3, 0, 0, 0], sizes = [1, 1, 8, 8], strides = [1, 1, 1, 1]} : vector<4x1x8x8xbf16> to vector<1x1x8x8xbf16>
    %80 = vector.shape_cast %79 : vector<1x1x8x8xbf16> to vector<1x8x8xbf16>
    %81 = tpu.concatenate %74, %76, %78, %80 in 2 : vector<1x8x8xbf16>, vector<1x8x8xbf16>, vector<1x8x8xbf16>, vector<1x8x8xbf16> -> vector<1x8x32xbf16>
    %82 = vector.shape_cast %81 : vector<1x8x32xbf16> to vector<8x32xbf16>
    %c0_24 = arith.constant 0 : index
    %c0_25 = arith.constant 0 : index
    %c0_26 = arith.constant 0 : index
    %83 = vector.load %arg5[%c0_24, %c0_25, %c0_26] : memref<1x32x32xbf16, #tpu.memory_space<vmem>>, vector<1x32x32xbf16>
    %84 = vector.shape_cast %83 : vector<1x32x32xbf16> to vector<32x32xbf16>
    %cst_27 = arith.constant dense<0.000000e+00> : vector<8x32xf32>
    %85 = tpu.matmul %82, %84, %cst_27 {dimension_numbers = #tpu.dot_dimension_numbers<[1], [0], [0], [1], [0, 0, 1, 1], [], []>} : vector<8x32xbf16>, vector<32x32xbf16>, vector<8x32xf32> -> vector<8x32xf32>
    %c0_28 = arith.constant 0 : index
    %c0_29 = arith.constant 0 : index
    %c0_30 = arith.constant 0 : index
    %86 = vector.load %arg6[%c0_28, %c0_29, %c0_30] : memref<1x1x32xf32, #tpu.memory_space<vmem>>, vector<1x1x32xf32>
    %87 = vector.shape_cast %86 : vector<1x1x32xf32> to vector<1x32xf32>
    %88 = vector.broadcast %87 : vector<1x32xf32> to vector<8x32xf32>
    %89 = arith.addf %85, %88 : vector<8x32xf32>
    %90 = arith.addf %3, %89 : vector<8x32xf32>
    %c0_31 = arith.constant 0 : index
    %c0_32 = arith.constant 0 : index
    %c0_33 = arith.constant 0 : index
    %91 = vector.load %arg13[%c0_31, %c0_32, %c0_33] : memref<1x1x32xf32, #tpu.memory_space<vmem>>, vector<1x1x32xf32>
    %92 = vector.shape_cast %91 : vector<1x1x32xf32> to vector<1x32xf32>
    %c0_34 = arith.constant 0 : index
    %c0_35 = arith.constant 0 : index
    %c0_36 = arith.constant 0 : index
    %93 = vector.load %arg14[%c0_34, %c0_35, %c0_36] : memref<1x1x32xf32, #tpu.memory_space<vmem>>, vector<1x1x32xf32>
    %94 = vector.shape_cast %93 : vector<1x1x32xf32> to vector<1x32xf32>
    %cst_37 = arith.constant dense<0.000000e+00> : vector<8xf32>
    %95 = vector.multi_reduction <add>, %90, %cst_37 [1] : vector<8x32xf32> to vector<8xf32>
    %96 = vector.shape_cast %95 : vector<8xf32> to vector<8x1xf32>
    %cst_38 = arith.constant 3.200000e+01 : f32
    %97 = vector.broadcast %cst_38 : f32 to vector<8x1xf32>
    %98 = arith.divf %96, %97 : vector<8x1xf32>
    %99 = arith.mulf %90, %90 : vector<8x32xf32>
    %cst_39 = arith.constant dense<0.000000e+00> : vector<8xf32>
    %100 = vector.multi_reduction <add>, %99, %cst_39 [1] : vector<8x32xf32> to vector<8xf32>
    %101 = vector.shape_cast %100 : vector<8xf32> to vector<8x1xf32>
    %cst_40 = arith.constant 3.200000e+01 : f32
    %102 = vector.broadcast %cst_40 : f32 to vector<8x1xf32>
    %103 = arith.divf %101, %102 : vector<8x1xf32>
    %104 = arith.mulf %98, %98 : vector<8x1xf32>
    %105 = arith.subf %103, %104 : vector<8x1xf32>
    %cst_41 = arith.constant 0.000000e+00 : f32
    %106 = vector.broadcast %cst_41 : f32 to vector<8x1xf32>
    %107 = arith.maximumf %105, %106 : vector<8x1xf32>
    %108 = vector.broadcast %98 : vector<8x1xf32> to vector<8x32xf32>
    %109 = arith.subf %90, %108 : vector<8x32xf32>
    %cst_42 = arith.constant 9.99999974E-6 : f32
    %110 = vector.broadcast %cst_42 : f32 to vector<8x1xf32>
    %111 = arith.addf %107, %110 : vector<8x1xf32>
    %112 = math.rsqrt %111 : vector<8x1xf32>
    %113 = vector.broadcast %112 : vector<8x1xf32> to vector<8x32xf32>
    %114 = arith.mulf %109, %113 : vector<8x32xf32>
    %115 = vector.broadcast %92 : vector<1x32xf32> to vector<8x32xf32>
    %116 = arith.mulf %114, %115 : vector<8x32xf32>
    %117 = vector.broadcast %94 : vector<1x32xf32> to vector<8x32xf32>
    %118 = arith.addf %116, %117 : vector<8x32xf32>
    %119 = arith.truncf %118 : vector<8x32xf32> to vector<8x32xbf16>
    %c0_43 = arith.constant 0 : index
    %c0_44 = arith.constant 0 : index
    %c0_45 = arith.constant 0 : index
    %120 = vector.load %arg7[%c0_43, %c0_44, %c0_45] : memref<1x32x64xbf16, #tpu.memory_space<vmem>>, vector<1x32x64xbf16>
    %121 = vector.shape_cast %120 : vector<1x32x64xbf16> to vector<32x64xbf16>
    %cst_46 = arith.constant dense<0.000000e+00> : vector<8x64xf32>
    %122 = tpu.matmul %119, %121, %cst_46 {dimension_numbers = #tpu.dot_dimension_numbers<[1], [0], [0], [1], [0, 0, 1, 1], [], []>} : vector<8x32xbf16>, vector<32x64xbf16>, vector<8x64xf32> -> vector<8x64xf32>
    %c0_47 = arith.constant 0 : index
    %c0_48 = arith.constant 0 : index
    %c0_49 = arith.constant 0 : index
    %123 = vector.load %arg8[%c0_47, %c0_48, %c0_49] : memref<1x1x64xf32, #tpu.memory_space<vmem>>, vector<1x1x64xf32>
    %124 = vector.shape_cast %123 : vector<1x1x64xf32> to vector<1x64xf32>
    %125 = vector.broadcast %124 : vector<1x64xf32> to vector<8x64xf32>
    %126 = arith.addf %122, %125 : vector<8x64xf32>
    %cst_50 = arith.constant 0.000000e+00 : f32
    %127 = vector.broadcast %cst_50 : f32 to vector<8x64xf32>
    %128 = arith.maximumf %126, %127 : vector<8x64xf32>
    %129 = arith.truncf %128 : vector<8x64xf32> to vector<8x64xbf16>
    %c0_51 = arith.constant 0 : index
    %c0_52 = arith.constant 0 : index
    %c0_53 = arith.constant 0 : index
    %130 = vector.load %arg9[%c0_51, %c0_52, %c0_53] : memref<1x64x32xbf16, #tpu.memory_space<vmem>>, vector<1x64x32xbf16>
    %131 = vector.shape_cast %130 : vector<1x64x32xbf16> to vector<64x32xbf16>
    %cst_54 = arith.constant dense<0.000000e+00> : vector<8x32xf32>
    %132 = tpu.matmul %129, %131, %cst_54 {dimension_numbers = #tpu.dot_dimension_numbers<[1], [0], [0], [1], [0, 0, 1, 1], [], []>} : vector<8x64xbf16>, vector<64x32xbf16>, vector<8x32xf32> -> vector<8x32xf32>
    %c0_55 = arith.constant 0 : index
    %c0_56 = arith.constant 0 : index
    %c0_57 = arith.constant 0 : index
    %133 = vector.load %arg10[%c0_55, %c0_56, %c0_57] : memref<1x1x32xf32, #tpu.memory_space<vmem>>, vector<1x1x32xf32>
    %134 = vector.shape_cast %133 : vector<1x1x32xf32> to vector<1x32xf32>
    %135 = vector.broadcast %134 : vector<1x32xf32> to vector<8x32xf32>
    %136 = arith.addf %132, %135 : vector<8x32xf32>
    %137 = arith.addf %90, %136 : vector<8x32xf32>
    %c0_58 = arith.constant 0 : index
    %c0_59 = arith.constant 0 : index
    %138 = vector.load %arg18[%c0_58, %c0_59] : memref<8x32xf32, #tpu.memory_space<vmem>>, vector<8x32xf32>
    tpu.vector_store %arg18[%c0_58, %c0_59], %137 {strides = array<i32>} : memref<8x32xf32, #tpu.memory_space<vmem>>, vector<8x32xf32>,
    %c1_i32 = arith.constant 1 : i32
    %139 = arith.cmpi eq, %arg1, %c1_i32 : i32
    %140 = arith.extui %139 : i1 to i32
    %c0_i32_60 = arith.constant 0 : i32
    %141 = arith.cmpi ne, %140, %c0_i32_60 : i32
    scf.if %141 {
      %c0_61 = arith.constant 0 : index
      %c0_62 = arith.constant 0 : index
      %142 = vector.load %arg15[%c0_61, %c0_62] : memref<1x32xf32, #tpu.memory_space<vmem>>, vector<1x32xf32>
      %c0_63 = arith.constant 0 : index
      %c0_64 = arith.constant 0 : index
      %143 = vector.load %arg16[%c0_63, %c0_64] : memref<1x32xf32, #tpu.memory_space<vmem>>, vector<1x32xf32>
      %cst_65 = arith.constant dense<0.000000e+00> : vector<8xf32>
      %144 = vector.multi_reduction <add>, %137, %cst_65 [1] : vector<8x32xf32> to vector<8xf32>
      %145 = vector.shape_cast %144 : vector<8xf32> to vector<8x1xf32>
      %cst_66 = arith.constant 3.200000e+01 : f32
      %146 = vector.broadcast %cst_66 : f32 to vector<8x1xf32>
      %147 = arith.divf %145, %146 : vector<8x1xf32>
      %148 = arith.mulf %137, %137 : vector<8x32xf32>
      %cst_67 = arith.constant dense<0.000000e+00> : vector<8xf32>
      %149 = vector.multi_reduction <add>, %148, %cst_67 [1] : vector<8x32xf32> to vector<8xf32>
      %150 = vector.shape_cast %149 : vector<8xf32> to vector<8x1xf32>
      %cst_68 = arith.constant 3.200000e+01 : f32
      %151 = vector.broadcast %cst_68 : f32 to vector<8x1xf32>
      %152 = arith.divf %150, %151 : vector<8x1xf32>
      %153 = arith.mulf %147, %147 : vector<8x1xf32>
      %154 = arith.subf %152, %153 : vector<8x1xf32>
      %cst_69 = arith.constant 0.000000e+00 : f32
      %155 = vector.broadcast %cst_69 : f32 to vector<8x1xf32>
      %156 = arith.maximumf %154, %155 : vector<8x1xf32>
      %157 = vector.broadcast %147 : vector<8x1xf32> to vector<8x32xf32>
      %158 = arith.subf %137, %157 : vector<8x32xf32>
      %cst_70 = arith.constant 9.99999974E-6 : f32
      %159 = vector.broadcast %cst_70 : f32 to vector<8x1xf32>
      %160 = arith.addf %156, %159 : vector<8x1xf32>
      %161 = math.rsqrt %160 : vector<8x1xf32>
      %162 = vector.broadcast %161 : vector<8x1xf32> to vector<8x32xf32>
      %163 = arith.mulf %158, %162 : vector<8x32xf32>
      %164 = vector.broadcast %142 : vector<1x32xf32> to vector<8x32xf32>
      %165 = arith.mulf %163, %164 : vector<8x32xf32>
      %166 = vector.broadcast %143 : vector<1x32xf32> to vector<8x32xf32>
      %167 = arith.addf %165, %166 : vector<8x32xf32>
      %168 = vector.shape_cast %167 : vector<8x32xf32> to vector<1x8x32xf32>
      %c0_71 = arith.constant 0 : index
      %c0_72 = arith.constant 0 : index
      %c0_73 = arith.constant 0 : index
      %169 = vector.load %arg17[%c0_71, %c0_72, %c0_73] : memref<1x8x32xf32, #tpu.memory_space<vmem>>, vector<1x8x32xf32>
      tpu.vector_store %arg17[%c0_71, %c0_72, %c0_73], %168 {strides = array<i32>} : memref<1x8x32xf32, #tpu.memory_space<vmem>>, vector<1x8x32xf32>,
    } else {
    }
    return
  }
  func.func @transform_0(%arg0: i32, %arg1: i32) -> (i32, i32, i32) {
    %c0_i32 = arith.constant 0 : i32
    %c0_i32_0 = arith.constant 0 : i32
    %c0_i32_1 = arith.constant 0 : i32
    return %arg0, %c0_i32, %c0_i32_0 : i32, i32, i32
  }
  func.func @transform_1(%arg0: i32, %arg1: i32) -> (i32, i32, i32) {
    %c0_i32 = arith.constant 0 : i32
    %c0_i32_0 = arith.constant 0 : i32
    %c0_i32_1 = arith.constant 0 : i32
    return %arg1, %c0_i32, %c0_i32_0 : i32, i32, i32
  }
  func.func @transform_2(%arg0: i32, %arg1: i32) -> (i32, i32, i32) {
    %c0_i32 = arith.constant 0 : i32
    %c0_i32_0 = arith.constant 0 : i32
    %c0_i32_1 = arith.constant 0 : i32
    return %arg1, %c0_i32, %c0_i32_0 : i32, i32, i32
  }
  func.func @transform_3(%arg0: i32, %arg1: i32) -> (i32, i32, i32) {
    %c0_i32 = arith.constant 0 : i32
    %c0_i32_0 = arith.constant 0 : i32
    %c0_i32_1 = arith.constant 0 : i32
    return %arg1, %c0_i32, %c0_i32_0 : i32, i32, i32
  }
  func.func @transform_4(%arg0: i32, %arg1: i32) -> (i32, i32, i32) {
    %c0_i32 = arith.constant 0 : i32
    %c0_i32_0 = arith.constant 0 : i32
    %c0_i32_1 = arith.constant 0 : i32
    return %arg1, %c0_i32, %c0_i32_0 : i32, i32, i32
  }
  func.func @transform_5(%arg0: i32, %arg1: i32) -> (i32, i32, i32) {
    %c0_i32 = arith.constant 0 : i32
    %c0_i32_0 = arith.constant 0 : i32
    %c0_i32_1 = arith.constant 0 : i32
    return %arg1, %c0_i32, %c0_i32_0 : i32, i32, i32
  }
  func.func @transform_6(%arg0: i32, %arg1: i32) -> (i32, i32, i32) {
    %c0_i32 = arith.constant 0 : i32
    %c0_i32_0 = arith.constant 0 : i32
    %c0_i32_1 = arith.constant 0 : i32
    return %arg1, %c0_i32, %c0_i32_0 : i32, i32, i32
  }
  func.func @transform_7(%arg0: i32, %arg1: i32) -> (i32, i32, i32) {
    %c0_i32 = arith.constant 0 : i32
    %c0_i32_0 = arith.constant 0 : i32
    %c0_i32_1 = arith.constant 0 : i32
    return %arg1, %c0_i32, %c0_i32_0 : i32, i32, i32
  }
  func.func @transform_8(%arg0: i32, %arg1: i32) -> (i32, i32, i32) {
    %c0_i32 = arith.constant 0 : i32
    %c0_i32_0 = arith.constant 0 : i32
    %c0_i32_1 = arith.constant 0 : i32
    return %arg1, %c0_i32, %c0_i32_0 : i32, i32, i32
  }
  func.func @transform_9(%arg0: i32, %arg1: i32) -> (i32, i32, i32) {
    %c0_i32 = arith.constant 0 : i32
    %c0_i32_0 = arith.constant 0 : i32
    %c0_i32_1 = arith.constant 0 : i32
    return %arg1, %c0_i32, %c0_i32_0 : i32, i32, i32
  }
  func.func @transform_10(%arg0: i32, %arg1: i32) -> (i32, i32, i32) {
    %c0_i32 = arith.constant 0 : i32
    %c0_i32_0 = arith.constant 0 : i32
    %c0_i32_1 = arith.constant 0 : i32
    return %arg1, %c0_i32, %c0_i32_0 : i32, i32, i32
  }
  func.func @transform_11(%arg0: i32, %arg1: i32) -> (i32, i32, i32) {
    %c0_i32 = arith.constant 0 : i32
    %c0_i32_0 = arith.constant 0 : i32
    %c0_i32_1 = arith.constant 0 : i32
    return %arg1, %c0_i32, %c0_i32_0 : i32, i32, i32
  }
  func.func @transform_12(%arg0: i32, %arg1: i32) -> (i32, i32, i32) {
    %c0_i32 = arith.constant 0 : i32
    %c0_i32_0 = arith.constant 0 : i32
    %c0_i32_1 = arith.constant 0 : i32
    return %arg1, %c0_i32, %c0_i32_0 : i32, i32, i32
  }
  func.func @transform_13(%arg0: i32, %arg1: i32) -> (i32, i32) {
    %c0_i32 = arith.constant 0 : i32
    %c0_i32_0 = arith.constant 0 : i32
    %c0_i32_1 = arith.constant 0 : i32
    return %c0_i32, %c0_i32_0 : i32, i32
  }
  func.func @transform_14(%arg0: i32, %arg1: i32) -> (i32, i32) {
    %c0_i32 = arith.constant 0 : i32
    %c0_i32_0 = arith.constant 0 : i32
    %c0_i32_1 = arith.constant 0 : i32
    return %c0_i32, %c0_i32_0 : i32, i32
  }
  func.func @transform_15(%arg0: i32, %arg1: i32) -> (i32, i32, i32) {
    %c0_i32 = arith.constant 0 : i32
    %c0_i32_0 = arith.constant 0 : i32
    %c0_i32_1 = arith.constant 0 : i32
    return %arg0, %c0_i32, %c0_i32_0 : i32, i32, i32
  }
}

</mosaic_0001>

<llo_original>
// kernel: transformer_encoder.1
$region0: #{transformer_encoder.1}
  #allocation0 [shape = 'u32[]', space=smem, size = 0x4, offset = 0x4, fixed_abs, tag = 'smem constant byte address 0x4 - core index']
  #allocation1 [shape = 'u32[72,128]{1,0:T(1,128)}', space=vmem, size = 0x9000, scoped, tag = 'internal scratch']
  #allocation2 [shape = 'f32[8,32]{1,0:T(8,128)}', space=vmem, size = 0x1000, scoped, tag = 'scratch operand']
  %s0 = inlined_call_operand.vmem [shape: f32[2,8,32], index: 0, kind: input, shape index: {}, may-alias: {0,15}]
  %s1 = inlined_call_operand.vmem [shape: bf16[2,32,96], index: 1, kind: input, shape index: {}]
  %s2 = inlined_call_operand.vmem [shape: f32[2,1,96], index: 2, kind: input, shape index: {}]
  %s3 = inlined_call_operand.vmem [shape: bf16[2,32,32], index: 3, kind: input, shape index: {}]
  %s4 = inlined_call_operand.vmem [shape: f32[2,1,32], index: 4, kind: input, shape index: {}]
  %s5 = inlined_call_operand.vmem [shape: bf16[2,32,64], index: 5, kind: input, shape index: {}]
  %s6 = inlined_call_operand.vmem [shape: f32[2,1,64], index: 6, kind: input, shape index: {}]
  %s7 = inlined_call_operand.vmem [shape: bf16[2,64,32], index: 7, kind: input, shape index: {}]
  %s8 = inlined_call_operand.vmem [shape: f32[2,1,32], index: 8, kind: input, shape index: {}]
  %s9 = inlined_call_operand.vmem [shape: f32[2,1,32], index: 9, kind: input, shape index: {}]
  %s10 = inlined_call_operand.hbm [shape: f32[2,1,32], index: 10, kind: input, shape index: {}]
  %s11 = inlined_call_operand.hbm [shape: f32[2,1,32], index: 11, kind: input, shape index: {}]
  %s12 = inlined_call_operand.hbm [shape: f32[2,1,32], index: 12, kind: input, shape index: {}]
  %s13 = inlined_call_operand.vmem [shape: f32[1,32], index: 13, kind: input, shape index: {}]
  %s14 = inlined_call_operand.hbm [shape: f32[1,32], index: 14, kind: input, shape index: {}]
  %s15 = inlined_call_operand.vmem [shape: f32[2,8,32], index: 15, kind: output, shape index: {}, may-alias: {0,15}]
  %s16 = sld [smem:[#allocation0]]
  $region117: #{transformer_encoder.1} parent=0
    _
  %s18 = ssub.s32 1, %s16
  %s19 = scalar_select 0, %s18, %s16
  $region1: #{transformer_encoder.1} parent=0
    #allocation3 [shape = 'u8[1024]{0}', space=vmem, size = 0x400, scoped, tag = 'input window, operand 10']
    #allocation4 [shape = 's32[2]{0}', space=sflag, size = 0x8, scoped, tag = 'scoped memory for transformer_encoder.1']
    #allocation5 [shape = 'u8[1024]{0}', space=vmem, size = 0x400, scoped, tag = 'input window, operand 11']
    #allocation6 [shape = 's32[2]{0}', space=sflag, size = 0x8, scoped, tag = 'scoped memory for transformer_encoder.1']
    #allocation7 [shape = 'u8[1024]{0}', space=vmem, size = 0x400, scoped, tag = 'input window, operand 12']
    #allocation8 [shape = 'u8[512]{0}', space=vmem, size = 0x400, scoped, tag = 'input window, operand 14, single buffered']
    #allocation9 [shape = 's32[1]{0}', space=sflag, size = 0x4, scoped, tag = 'scoped memory for transformer_encoder.1']
    %20 = vsyncpa [#allocation4], 0
    %s21 = scalar_lea.sflag [#allocation4], 1
    %22 = vsyncpa %s21, 0
    %23 = vsyncpa [#allocation6], 0
    %s24 = scalar_lea.sflag [#allocation6], 1
    %25 = vsyncpa %s24, 0
    %26 = vsyncpa [#allocation9], 0
    loop: start=0, step=1, limit=6
    $region2: #{transformer_encoder.1} parent=1 // loop_pre_header
      _
    $region3: #{transformer_encoder.1} parent=1 // loop_header
      %s28 = sphi 0, %s32
      %p29 = scmp.ge.s32.totalorder %s28, 6
      %s35 = sphi 0, %s47
      %s36 = sphi 0, %s43
      %s37 = sphi 0, %s35
      %s38 = sphi 0, %s36
      %s39 = sphi 0, %s37
      %s40 = sphi 0, %s38
      %s50 = sphi 0, %s52
      %s53 = sphi 0, %s50
      %s54 = sphi 0, %s53
      %s70 = sphi 0, %s54
      %s76 = sphi 0, %s78
      %s79 = sphi 0, %s76
      %s80 = sphi 0, %s79
      %s96 = sphi 0, %s80
      %s102 = sphi 0, %s104
      %s105 = sphi 0, %s102
      %s106 = sphi 0, %s105
      %s122 = sphi 0, %s106
      %s128 = sphi 0, %s130
      %s131 = sphi 0, %s128
      %s132 = sphi 0, %s131
      %s148 = sphi 0, %s132
      %s154 = sphi 0, %s156
      %s157 = sphi 0, %s154
      %s158 = sphi 0, %s157
      %s174 = sphi 0, %s158
      %s180 = sphi 0, %s182
      %s183 = sphi 0, %s180
      %s184 = sphi 0, %s183
      %s200 = sphi 0, %s184
      %s206 = sphi 0, %s208
      %s209 = sphi 0, %s206
      %s210 = sphi 0, %s209
      %s226 = sphi 0, %s210
      %s232 = sphi 0, %s234
      %s235 = sphi 0, %s232
      %s236 = sphi 0, %s235
      %s252 = sphi 0, %s236
      %s258 = sphi 0, %s260
      %s261 = sphi 0, %s258
      %s262 = sphi 0, %s261
      %s278 = sphi 0, %s262
      %s284 = sphi 0, %s286
      %s287 = sphi 0, %s284
      %s288 = sphi 0, %s287
      %s304 = sphi 0, %s288
      %s310 = sphi 0, %s312
      %s313 = sphi 0, %s310
      %s314 = sphi 0, %s313
      %s330 = sphi 0, %s314
      %s336 = sphi 0, %s338
      %s339 = sphi 0, %s336
      %s340 = sphi 0, %s339
      %s356 = sphi 0, %s340
      %s362 = sphi 0, %s364
      %s365 = sphi 0, %s362
      %s366 = sphi 0, %s365
      %s382 = sphi 0, %s366
      %s386 = sphi 0, %s386
      %s388 = sphi 0, %s386
      %s389 = sphi 0, %s388
      %s403 = sphi 0, %s389
      %s407 = sphi 0, %s407
      %s409 = sphi 0, %s407
      %s410 = sphi 0, %s409
      %s424 = sphi 0, %s410
      %s430 = sphi 0, %s432
      %s433 = sphi 0, %s430
      %s434 = sphi 0, %s433
      %s450 = sphi 0, %s434
    $region4: #{transformer_encoder.1} parent=1 // loop_header_branch
      %31 = sbr.rel (%p29) target = $region8
    $region5: #{transformer_encoder.1} parent=1 // loop_body
      %s33 = ssub.s32 %s28, 1
      %s34 = ssub.s32 %s28, 2
      %s41 = sadd.s32 1, %s36
      %p42 = scmp.ge.s32.totalorder %s41, 2
      %s43 = scalar_select %p42, 0, %s41
      %s44 = sadd.s32 1, %s35
      %s45 = scalar_select %p42, %s44, %s35
      %p46 = scmp.ge.s32.totalorder %s45, 2
      %s47 = scalar_select %p46, 0, %s45
      %s48 = ssub.s32 %s35, %s47
      %p49 = scmp.eq.s32.totalorder %s48, 0
      %s51 = sadd.s32 %s50, 1
      %s52 = scalar_select %p49, %s50, %s51
      %p55 = pneg %p49
      %p56 = scmp.eq.s32.totalorder %s28, 3
      %p57 = por %p55, %p56
      %p58 = scmp.ne.s32.totalorder %s50, %s53
      %p59 = scmp.eq.s32.totalorder %s28, 0
      %p60 = por %p58, %p59
      %p61 = scmp.ne.s32.totalorder %s50, %s53
      %p62 = scmp.eq.s32.totalorder %s33, 3
      %p63 = por %p61, %p62
      %p64 = scmp.ne.s32.totalorder %s53, %s54
      %p65 = scmp.eq.s32.totalorder %s33, 0
      %p66 = por %p64, %p65
      %p67 = scmp.ne.s32.totalorder %s53, %s54
      %p68 = scmp.eq.s32.totalorder %s34, 3
      %p69 = por %p67, %p68
      %p71 = scmp.ne.s32.totalorder %s54, %s70
      %p72 = scmp.eq.s32.totalorder %s34, 0
      %p73 = por %p71, %p72
      %s74 = ssub.s32 %s36, %s43
      %p75 = scmp.eq.s32.totalorder %s74, 0
      %s77 = sadd.s32 %s76, 1
      %s78 = scalar_select %p75, %s76, %s77
      %p81 = pneg %p75
      %p82 = scmp.eq.s32.totalorder %s28, 3
      %p83 = por %p81, %p82
      %p84 = scmp.ne.s32.totalorder %s76, %s79
      %p85 = scmp.eq.s32.totalorder %s28, 0
      %p86 = por %p84, %p85
      %p87 = scmp.ne.s32.totalorder %s76, %s79
      %p88 = scmp.eq.s32.totalorder %s33, 3
      %p89 = por %p87, %p88
      %p90 = scmp.ne.s32.totalorder %s79, %s80
      %p91 = scmp.eq.s32.totalorder %s33, 0
      %p92 = por %p90, %p91
      %p93 = scmp.ne.s32.totalorder %s79, %s80
      %p94 = scmp.eq.s32.totalorder %s34, 3
      %p95 = por %p93, %p94
      %p97 = scmp.ne.s32.totalorder %s80, %s96
      %p98 = scmp.eq.s32.totalorder %s34, 0
      %p99 = por %p97, %p98
      %s100 = ssub.s32 %s36, %s43
      %p101 = scmp.eq.s32.totalorder %s100, 0
      %s103 = sadd.s32 %s102, 1
      %s104 = scalar_select %p101, %s102, %s103
      %p107 = pneg %p101
      %p108 = scmp.eq.s32.totalorder %s28, 3
      %p109 = por %p107, %p108
      %p110 = scmp.ne.s32.totalorder %s102, %s105
      %p111 = scmp.eq.s32.totalorder %s28, 0
      %p112 = por %p110, %p111
      %p113 = scmp.ne.s32.totalorder %s102, %s105
      %p114 = scmp.eq.s32.totalorder %s33, 3
      %p115 = por %p113, %p114
      %p116 = scmp.ne.s32.totalorder %s105, %s106
      %p117 = scmp.eq.s32.totalorder %s33, 0
      %p118 = por %p116, %p117
      %p119 = scmp.ne.s32.totalorder %s105, %s106
      %p120 = scmp.eq.s32.totalorder %s34, 3
      %p121 = por %p119, %p120
      %p123 = scmp.ne.s32.totalorder %s106, %s122
      %p124 = scmp.eq.s32.totalorder %s34, 0
      %p125 = por %p123, %p124
      %s126 = ssub.s32 %s36, %s43
      %p127 = scmp.eq.s32.totalorder %s126, 0
      %s129 = sadd.s32 %s128, 1
      %s130 = scalar_select %p127, %s128, %s129
      %p133 = pneg %p127
      %p134 = scmp.eq.s32.totalorder %s28, 3
      %p135 = por %p133, %p134
      %p136 = scmp.ne.s32.totalorder %s128, %s131
      %p137 = scmp.eq.s32.totalorder %s28, 0
      %p138 = por %p136, %p137
      %p139 = scmp.ne.s32.totalorder %s128, %s131
      %p140 = scmp.eq.s32.totalorder %s33, 3
      %p141 = por %p139, %p140
      %p142 = scmp.ne.s32.totalorder %s131, %s132
      %p143 = scmp.eq.s32.totalorder %s33, 0
      %p144 = por %p142, %p143
      %p145 = scmp.ne.s32.totalorder %s131, %s132
      %p146 = scmp.eq.s32.totalorder %s34, 3
      %p147 = por %p145, %p146
      %p149 = scmp.ne.s32.totalorder %s132, %s148
      %p150 = scmp.eq.s32.totalorder %s34, 0
      %p151 = por %p149, %p150
      %s152 = ssub.s32 %s36, %s43
      %p153 = scmp.eq.s32.totalorder %s152, 0
      %s155 = sadd.s32 %s154, 1
      %s156 = scalar_select %p153, %s154, %s155
      %p159 = pneg %p153
      %p160 = scmp.eq.s32.totalorder %s28, 3
      %p161 = por %p159, %p160
      %p162 = scmp.ne.s32.totalorder %s154, %s157
      %p163 = scmp.eq.s32.totalorder %s28, 0
      %p164 = por %p162, %p163
      %p165 = scmp.ne.s32.totalorder %s154, %s157
      %p166 = scmp.eq.s32.totalorder %s33, 3
      %p167 = por %p165, %p166
      %p168 = scmp.ne.s32.totalorder %s157, %s158
      %p169 = scmp.eq.s32.totalorder %s33, 0
      %p170 = por %p168, %p169
      %p171 = scmp.ne.s32.totalorder %s157, %s158
      %p172 = scmp.eq.s32.totalorder %s34, 3
      %p173 = por %p171, %p172
      %p175 = scmp.ne.s32.totalorder %s158, %s174
      %p176 = scmp.eq.s32.totalorder %s34, 0
      %p177 = por %p175, %p176
      %s178 = ssub.s32 %s36, %s43
      %p179 = scmp.eq.s32.totalorder %s178, 0
      %s181 = sadd.s32 %s180, 1
      %s182 = scalar_select %p179, %s180, %s181
      %p185 = pneg %p179
      %p186 = scmp.eq.s32.totalorder %s28, 3
      %p187 = por %p185, %p186
      %p188 = scmp.ne.s32.totalorder %s180, %s183
      %p189 = scmp.eq.s32.totalorder %s28, 0
      %p190 = por %p188, %p189
      %p191 = scmp.ne.s32.totalorder %s180, %s183
      %p192 = scmp.eq.s32.totalorder %s33, 3
      %p193 = por %p191, %p192
      %p194 = scmp.ne.s32.totalorder %s183, %s184
      %p195 = scmp.eq.s32.totalorder %s33, 0
      %p196 = por %p194, %p195
      %p197 = scmp.ne.s32.totalorder %s183, %s184
      %p198 = scmp.eq.s32.totalorder %s34, 3
      %p199 = por %p197, %p198
      %p201 = scmp.ne.s32.totalorder %s184, %s200
      %p202 = scmp.eq.s32.totalorder %s34, 0
      %p203 = por %p201, %p202
      %s204 = ssub.s32 %s36, %s43
      %p205 = scmp.eq.s32.totalorder %s204, 0
      %s207 = sadd.s32 %s206, 1
      %s208 = scalar_select %p205, %s206, %s207
      %p211 = pneg %p205
      %p212 = scmp.eq.s32.totalorder %s28, 3
      %p213 = por %p211, %p212
      %p214 = scmp.ne.s32.totalorder %s206, %s209
      %p215 = scmp.eq.s32.totalorder %s28, 0
      %p216 = por %p214, %p215
      %p217 = scmp.ne.s32.totalorder %s206, %s209
      %p218 = scmp.eq.s32.totalorder %s33, 3
      %p219 = por %p217, %p218
      %p220 = scmp.ne.s32.totalorder %s209, %s210
      %p221 = scmp.eq.s32.totalorder %s33, 0
      %p222 = por %p220, %p221
      %p223 = scmp.ne.s32.totalorder %s209, %s210
      %p224 = scmp.eq.s32.totalorder %s34, 3
      %p225 = por %p223, %p224
      %p227 = scmp.ne.s32.totalorder %s210, %s226
      %p228 = scmp.eq.s32.totalorder %s34, 0
      %p229 = por %p227, %p228
      %s230 = ssub.s32 %s36, %s43
      %p231 = scmp.eq.s32.totalorder %s230, 0
      %s233 = sadd.s32 %s232, 1
      %s234 = scalar_select %p231, %s232, %s233
      %p237 = pneg %p231
      %p238 = scmp.eq.s32.totalorder %s28, 3
      %p239 = por %p237, %p238
      %p240 = scmp.ne.s32.totalorder %s232, %s235
      %p241 = scmp.eq.s32.totalorder %s28, 0
      %p242 = por %p240, %p241
      %p243 = scmp.ne.s32.totalorder %s232, %s235
      %p244 = scmp.eq.s32.totalorder %s33, 3
      %p245 = por %p243, %p244
      %p246 = scmp.ne.s32.totalorder %s235, %s236
      %p247 = scmp.eq.s32.totalorder %s33, 0
      %p248 = por %p246, %p247
      %p249 = scmp.ne.s32.totalorder %s235, %s236
      %p250 = scmp.eq.s32.totalorder %s34, 3
      %p251 = por %p249, %p250
      %p253 = scmp.ne.s32.totalorder %s236, %s252
      %p254 = scmp.eq.s32.totalorder %s34, 0
      %p255 = por %p253, %p254
      %s256 = ssub.s32 %s36, %s43
      %p257 = scmp.eq.s32.totalorder %s256, 0
      %s259 = sadd.s32 %s258, 1
      %s260 = scalar_select %p257, %s258, %s259
      %p263 = pneg %p257
      %p264 = scmp.eq.s32.totalorder %s28, 3
      %p265 = por %p263, %p264
      %p266 = scmp.ne.s32.totalorder %s258, %s261
      %p267 = scmp.eq.s32.totalorder %s28, 0
      %p268 = por %p266, %p267
      %p269 = scmp.ne.s32.totalorder %s258, %s261
      %p270 = scmp.eq.s32.totalorder %s33, 3
      %p271 = por %p269, %p270
      %p272 = scmp.ne.s32.totalorder %s261, %s262
      %p273 = scmp.eq.s32.totalorder %s33, 0
      %p274 = por %p272, %p273
      %p275 = scmp.ne.s32.totalorder %s261, %s262
      %p276 = scmp.eq.s32.totalorder %s34, 3
      %p277 = por %p275, %p276
      %p279 = scmp.ne.s32.totalorder %s262, %s278
      %p280 = scmp.eq.s32.totalorder %s34, 0
      %p281 = por %p279, %p280
      %s282 = ssub.s32 %s36, %s43
      %p283 = scmp.eq.s32.totalorder %s282, 0
      %s285 = sadd.s32 %s284, 1
      %s286 = scalar_select %p283, %s284, %s285
      %p289 = pneg %p283
      %p290 = scmp.eq.s32.totalorder %s28, 3
      %p291 = por %p289, %p290
      %p292 = scmp.ne.s32.totalorder %s284, %s287
      %p293 = scmp.eq.s32.totalorder %s28, 0
      %p294 = por %p292, %p293
      %p295 = scmp.ne.s32.totalorder %s284, %s287
      %p296 = scmp.eq.s32.totalorder %s33, 3
      %p297 = por %p295, %p296
      %p298 = scmp.ne.s32.totalorder %s287, %s288
      %p299 = scmp.eq.s32.totalorder %s33, 0
      %p300 = por %p298, %p299
      %p301 = scmp.ne.s32.totalorder %s287, %s288
      %p302 = scmp.eq.s32.totalorder %s34, 3
      %p303 = por %p301, %p302
      %p305 = scmp.ne.s32.totalorder %s288, %s304
      %p306 = scmp.eq.s32.totalorder %s34, 0
      %p307 = por %p305, %p306
      %s308 = ssub.s32 %s36, %s43
      %p309 = scmp.eq.s32.totalorder %s308, 0
      %s311 = sadd.s32 %s310, 1
      %s312 = scalar_select %p309, %s310, %s311
      %p315 = pneg %p309
      %p316 = scmp.eq.s32.totalorder %s28, 3
      %p317 = por %p315, %p316
      %p318 = scmp.ne.s32.totalorder %s310, %s313
      %p319 = scmp.eq.s32.totalorder %s28, 0
      %p320 = por %p318, %p319
      %p321 = scmp.ne.s32.totalorder %s310, %s313
      %p322 = scmp.eq.s32.totalorder %s33, 3
      %p323 = por %p321, %p322
      %p324 = scmp.ne.s32.totalorder %s313, %s314
      %p325 = scmp.eq.s32.totalorder %s33, 0
      %p326 = por %p324, %p325
      %p327 = scmp.ne.s32.totalorder %s313, %s314
      %p328 = scmp.eq.s32.totalorder %s34, 3
      %p329 = por %p327, %p328
      %p331 = scmp.ne.s32.totalorder %s314, %s330
      %p332 = scmp.eq.s32.totalorder %s34, 0
      %p333 = por %p331, %p332
      %s334 = ssub.s32 %s36, %s43
      %p335 = scmp.eq.s32.totalorder %s334, 0
      %s337 = sadd.s32 %s336, 1
      %s338 = scalar_select %p335, %s336, %s337
      %p341 = pneg %p335
      %p342 = scmp.eq.s32.totalorder %s28, 3
      %p343 = por %p341, %p342
      %p344 = scmp.ne.s32.totalorder %s336, %s339
      %p345 = scmp.eq.s32.totalorder %s28, 0
      %p346 = por %p344, %p345
      %p347 = scmp.ne.s32.totalorder %s336, %s339
      %p348 = scmp.eq.s32.totalorder %s33, 3
      %p349 = por %p347, %p348
      %p350 = scmp.ne.s32.totalorder %s339, %s340
      %p351 = scmp.eq.s32.totalorder %s33, 0
      %p352 = por %p350, %p351
      %p353 = scmp.ne.s32.totalorder %s339, %s340
      %p354 = scmp.eq.s32.totalorder %s34, 3
      %p355 = por %p353, %p354
      %p357 = scmp.ne.s32.totalorder %s340, %s356
      %p358 = scmp.eq.s32.totalorder %s34, 0
      %p359 = por %p357, %p358
      %s360 = ssub.s32 %s36, %s43
      %p361 = scmp.eq.s32.totalorder %s360, 0
      %s363 = sadd.s32 %s362, 1
      %s364 = scalar_select %p361, %s362, %s363
      %p367 = pneg %p361
      %p368 = scmp.eq.s32.totalorder %s28, 3
      %p369 = por %p367, %p368
      %p370 = scmp.ne.s32.totalorder %s362, %s365
      %p371 = scmp.eq.s32.totalorder %s28, 0
      %p372 = por %p370, %p371
      %p373 = scmp.ne.s32.totalorder %s362, %s365
      %p374 = scmp.eq.s32.totalorder %s33, 3
      %p375 = por %p373, %p374
      %p376 = scmp.ne.s32.totalorder %s365, %s366
      %p377 = scmp.eq.s32.totalorder %s33, 0
      %p378 = por %p376, %p377
      %p379 = scmp.ne.s32.totalorder %s365, %s366
      %p380 = scmp.eq.s32.totalorder %s34, 3
      %p381 = por %p379, %p380
      %p383 = scmp.ne.s32.totalorder %s366, %s382
      %p384 = scmp.eq.s32.totalorder %s34, 0
      %p385 = por %p383, %p384
      %s387 = sadd.s32 %s386, 1
      %p390 = scmp.eq.s32.totalorder %s28, 3
      %p391 = scmp.ne.s32.totalorder %s386, %s388
      %p392 = scmp.eq.s32.totalorder %s28, 0
      %p393 = por %p391, %p392
      %p394 = scmp.ne.s32.totalorder %s386, %s388
      %p395 = scmp.eq.s32.totalorder %s33, 3
      %p396 = por %p394, %p395
      %p397 = scmp.ne.s32.totalorder %s388, %s389
      %p398 = scmp.eq.s32.totalorder %s33, 0
      %p399 = por %p397, %p398
      %p400 = scmp.ne.s32.totalorder %s388, %s389
      %p401 = scmp.eq.s32.totalorder %s34, 3
      %p402 = por %p400, %p401
      %p404 = scmp.ne.s32.totalorder %s389, %s403
      %p405 = scmp.eq.s32.totalorder %s34, 0
      %p406 = por %p404, %p405
      %s408 = sadd.s32 %s407, 1
      %p411 = scmp.eq.s32.totalorder %s28, 3
      %p412 = scmp.ne.s32.totalorder %s407, %s409
      %p413 = scmp.eq.s32.totalorder %s28, 0
      %p414 = por %p412, %p413
      %p415 = scmp.ne.s32.totalorder %s407, %s409
      %p416 = scmp.eq.s32.totalorder %s33, 3
      %p417 = por %p415, %p416
      %p418 = scmp.ne.s32.totalorder %s409, %s410
      %p419 = scmp.eq.s32.totalorder %s33, 0
      %p420 = por %p418, %p419
      %p421 = scmp.ne.s32.totalorder %s409, %s410
      %p422 = scmp.eq.s32.totalorder %s34, 3
      %p423 = por %p421, %p422
      %p425 = scmp.ne.s32.totalorder %s410, %s424
      %p426 = scmp.eq.s32.totalorder %s34, 0
      %p427 = por %p425, %p426
      %s428 = ssub.s32 %s35, %s47
      %p429 = scmp.eq.s32.totalorder %s428, 0
      %s431 = sadd.s32 %s430, 1
      %s432 = scalar_select %p429, %s430, %s431
      %p435 = pneg %p429
      %p436 = scmp.eq.s32.totalorder %s28, 3
      %p437 = por %p435, %p436
      %p438 = scmp.ne.s32.totalorder %s430, %s433
      %p439 = scmp.eq.s32.totalorder %s28, 0
      %p440 = por %p438, %p439
      %p441 = scmp.ne.s32.totalorder %s430, %s433
      %p442 = scmp.eq.s32.totalorder %s33, 3
      %p443 = por %p441, %p442
      %p444 = scmp.ne.s32.totalorder %s433, %s434
      %p445 = scmp.eq.s32.totalorder %s33, 0
      %p446 = por %p444, %p445
      %p447 = scmp.ne.s32.totalorder %s433, %s434
      %p448 = scmp.eq.s32.totalorder %s34, 3
      %p449 = por %p447, %p448
      %p451 = scmp.ne.s32.totalorder %s434, %s450
      %p452 = scmp.eq.s32.totalorder %s34, 0
      %p453 = por %p451, %p452
      %p454 = scmp.le.s32.totalorder 1, %s28
      %p455 = scmp.lt.s32.totalorder %s28, 5
      %p456 = pnand %p454, %p455
      %p457 = pneg %p456
      // Predicated region
      $region9: #{transformer_encoder.1} parent=5 // pred_check
        _
      $region10: #{transformer_encoder.1} parent=5 // pred_check_branch
        %459 = sbr.rel (%p456) target = $region12
      $region11: #{transformer_encoder.1} parent=5 // pred_region
        %s460 = ssub.s32 %s28, 1
        // Predicated region
        $region13: #{transformer_encoder.1} parent=11 // pred_check
          %p461 = pneg %p399
        $region14: #{transformer_encoder.1} parent=11 // pred_check_branch
          %463 = sbr.rel (%p461) target = $region16
        $region15: #{transformer_encoder.1} parent=11 // pred_region
          _
        $region16: #{transformer_encoder.1} parent=11 // pred_fallthru
          _
        // Predicated region
        $region17: #{transformer_encoder.1} parent=11 // pred_check
          %p464 = pneg %p420
        $region18: #{transformer_encoder.1} parent=11 // pred_check_branch
          %466 = sbr.rel (%p464) target = $region20
        $region19: #{transformer_encoder.1} parent=11 // pred_region
          %468 = vsyncadd [#allocation9], 0
          %s470 = sshll.u32 %s14, 4
          %s471 = int_to_ptr.hbm [resolvable:$true] %s470
          %s472 = sshll.u32 [#allocation8], 4
          %s473 = int_to_ptr.vmem [resolvable:$true] %s472
          %475 = dma.hbm_to_vmem [thread:$0]  %s471, 16, %s473, [#allocation9]
        $region20: #{transformer_encoder.1} parent=11 // pred_fallthru
          _
      $region12: #{transformer_encoder.1} parent=5 // pred_fallthru
        _
      %p476 = scmp.lt.s32.totalorder %s28, 4
      // Predicated region
      $region21: #{transformer_encoder.1} parent=5 // pred_check
        %p477 = pneg %p476
      $region22: #{transformer_encoder.1} parent=5 // pred_check_branch
        %479 = sbr.rel (%p477) target = $region24
      $region23: #{transformer_encoder.1} parent=5 // pred_region
        // Predicated region
        $region25: #{transformer_encoder.1} parent=23 // pred_check
          %p480 = pneg %p60
        $region26: #{transformer_encoder.1} parent=23 // pred_check_branch
          %482 = sbr.rel (%p480) target = $region28
        $region27: #{transformer_encoder.1} parent=23 // pred_region
          %p483 = scmp.lt.s32.totalorder %s35, 1
          %s484 = scalar_select %p483, %s35, 1
          %s485 = smul.addr %s484, 8
          %s486 = scalar_lea.vmem %s0, %s485
        $region28: #{transformer_encoder.1} parent=23 // pred_fallthru
          _
        // Predicated region
        $region29: #{transformer_encoder.1} parent=23 // pred_check
          %p487 = pneg %p86
        $region30: #{transformer_encoder.1} parent=23 // pred_check_branch
          %489 = sbr.rel (%p487) target = $region32
        $region31: #{transformer_encoder.1} parent=23 // pred_region
          %p490 = scmp.lt.s32.totalorder %s36, 1
          %s491 = scalar_select %p490, %s36, 1
          %s492 = smul.addr %s491, 4
          %s493 = smul.addr %s492, 4
          %s494 = scalar_lea.vmem %s1, %s493
        $region32: #{transformer_encoder.1} parent=23 // pred_fallthru
          _
        // Predicated region
        $region33: #{transformer_encoder.1} parent=23 // pred_check
          %p495 = pneg %p112
        $region34: #{transformer_encoder.1} parent=23 // pred_check_branch
          %497 = sbr.rel (%p495) target = $region36
        $region35: #{transformer_encoder.1} parent=23 // pred_region
          %p498 = scmp.lt.s32.totalorder %s36, 1
          %s499 = scalar_select %p498, %s36, 1
          %s500 = scalar_lea.vmem %s2, %s499
        $region36: #{transformer_encoder.1} parent=23 // pred_fallthru
          _
        // Predicated region
        $region37: #{transformer_encoder.1} parent=23 // pred_check
          %p501 = pneg %p138
        $region38: #{transformer_encoder.1} parent=23 // pred_check_branch
          %503 = sbr.rel (%p501) target = $region40
        $region39: #{transformer_encoder.1} parent=23 // pred_region
          %p504 = scmp.lt.s32.totalorder %s36, 1
          %s505 = scalar_select %p504, %s36, 1
          %s506 = smul.addr %s505, 4
          %s507 = smul.addr %s506, 4
          %s508 = scalar_lea.vmem %s3, %s507
        $region40: #{transformer_encoder.1} parent=23 // pred_fallthru
          _
        // Predicated region
        $region41: #{transformer_encoder.1} parent=23 // pred_check
          %p509 = pneg %p164
        $region42: #{transformer_encoder.1} parent=23 // pred_check_branch
          %511 = sbr.rel (%p509) target = $region44
        $region43: #{transformer_encoder.1} parent=23 // pred_region
          %p512 = scmp.lt.s32.totalorder %s36, 1
          %s513 = scalar_select %p512, %s36, 1
          %s514 = scalar_lea.vmem %s4, %s513
        $region44: #{transformer_encoder.1} parent=23 // pred_fallthru
          _
        // Predicated region
        $region45: #{transformer_encoder.1} parent=23 // pred_check
          %p515 = pneg %p190
        $region46: #{transformer_encoder.1} parent=23 // pred_check_branch
          %517 = sbr.rel (%p515) target = $region48
        $region47: #{transformer_encoder.1} parent=23 // pred_region
          %p518 = scmp.lt.s32.totalorder %s36, 1
          %s519 = scalar_select %p518, %s36, 1
          %s520 = smul.addr %s519, 4
          %s521 = smul.addr %s520, 4
          %s522 = scalar_lea.vmem %s5, %s521
        $region48: #{transformer_encoder.1} parent=23 // pred_fallthru
          _
        // Predicated region
        $region49: #{transformer_encoder.1} parent=23 // pred_check
          %p523 = pneg %p216
        $region50: #{transformer_encoder.1} parent=23 // pred_check_branch
          %525 = sbr.rel (%p523) target = $region52
        $region51: #{transformer_encoder.1} parent=23 // pred_region
          %p526 = scmp.lt.s32.totalorder %s36, 1
          %s527 = scalar_select %p526, %s36, 1
          %s528 = scalar_lea.vmem %s6, %s527
        $region52: #{transformer_encoder.1} parent=23 // pred_fallthru
          _
        // Predicated region
        $region53: #{transformer_encoder.1} parent=23 // pred_check
          %p529 = pneg %p242
        $region54: #{transformer_encoder.1} parent=23 // pred_check_branch
          %531 = sbr.rel (%p529) target = $region56
        $region55: #{transformer_encoder.1} parent=23 // pred_region
          %p532 = scmp.lt.s32.totalorder %s36, 1
          %s533 = scalar_select %p532, %s36, 1
          %s534 = smul.addr %s533, 8
          %s535 = smul.addr %s534, 4
          %s536 = scalar_lea.vmem %s7, %s535
        $region56: #{transformer_encoder.1} parent=23 // pred_fallthru
          _
        // Predicated region
        $region57: #{transformer_encoder.1} parent=23 // pred_check
          %p537 = pneg %p268
        $region58: #{transformer_encoder.1} parent=23 // pred_check_branch
          %539 = sbr.rel (%p537) target = $region60
        $region59: #{transformer_encoder.1} parent=23 // pred_region
          %p540 = scmp.lt.s32.totalorder %s36, 1
          %s541 = scalar_select %p540, %s36, 1
          %s542 = scalar_lea.vmem %s8, %s541
        $region60: #{transformer_encoder.1} parent=23 // pred_fallthru
          _
        // Predicated region
        $region61: #{transformer_encoder.1} parent=23 // pred_check
          %p543 = pneg %p294
        $region62: #{transformer_encoder.1} parent=23 // pred_check_branch
          %545 = sbr.rel (%p543) target = $region64
        $region63: #{transformer_encoder.1} parent=23 // pred_region
          %p546 = scmp.lt.s32.totalorder %s36, 1
          %s547 = scalar_select %p546, %s36, 1
          %s548 = scalar_lea.vmem %s9, %s547
        $region64: #{transformer_encoder.1} parent=23 // pred_fallthru
          _
        // Predicated region
        $region65: #{transformer_encoder.1} parent=23 // pred_check
          %p549 = pneg %p320
        $region66: #{transformer_encoder.1} parent=23 // pred_check_branch
          %551 = sbr.rel (%p549) target = $region68
        $region67: #{transformer_encoder.1} parent=23 // pred_region
          %s552 = sand.u32 %s310, 1
          %s553 = scalar_lea.sflag [#allocation4], %s552
          %s554 = sand.u32 %s310, 1
          %s555 = scalar_lea.vmem [#allocation3], %s554
          %557 = vsyncadd %s553, 0
          %s558 = scalar_lea.hbm %s10, %s36
          %s560 = sshll.u32 %s558, 4
          %s561 = int_to_ptr.hbm [resolvable:$true] %s560
          %s562 = sshll.u32 %s555, 4
          %s563 = int_to_ptr.vmem [resolvable:$true] %s562
          %565 = dma.hbm_to_vmem [thread:$0]  %s561, 16, %s563, %s553
        $region68: #{transformer_encoder.1} parent=23 // pred_fallthru
          _
        // Predicated region
        $region69: #{transformer_encoder.1} parent=23 // pred_check
          %p566 = pneg %p346
        $region70: #{transformer_encoder.1} parent=23 // pred_check_branch
          %568 = sbr.rel (%p566) target = $region72
        $region71: #{transformer_encoder.1} parent=23 // pred_region
          %s569 = sand.u32 %s28, 1
          %s570 = scalar_lea.sflag [#allocation6], %s569
          %s571 = sand.u32 %s336, 1
          %s572 = scalar_lea.vmem [#allocation5], %s571
          %574 = vsyncadd %s570, 0
          %s575 = scalar_lea.hbm %s11, %s36
          %s577 = sshll.u32 %s575, 4
          %s578 = int_to_ptr.hbm [resolvable:$true] %s577
          %s579 = sshll.u32 %s572, 4
          %s580 = int_to_ptr.vmem [resolvable:$true] %s579
          %582 = dma.hbm_to_vmem [thread:$0]  %s578, 16, %s580, %s570
        $region72: #{transformer_encoder.1} parent=23 // pred_fallthru
          _
        // Predicated region
        $region73: #{transformer_encoder.1} parent=23 // pred_check
          %p583 = pneg %p372
        $region74: #{transformer_encoder.1} parent=23 // pred_check_branch
          %585 = sbr.rel (%p583) target = $region76
        $region75: #{transformer_encoder.1} parent=23 // pred_region
          %s586 = sand.u32 %s28, 1
          %s587 = scalar_lea.sflag [#allocation6], %s586
          %s588 = sand.u32 %s362, 1
          %s589 = scalar_lea.vmem [#allocation7], %s588
          %591 = vsyncadd %s587, 0
          %s592 = scalar_lea.hbm %s12, %s36
          %s594 = sshll.u32 %s592, 4
          %s595 = int_to_ptr.hbm [resolvable:$true] %s594
          %s596 = sshll.u32 %s589, 4
          %s597 = int_to_ptr.vmem [resolvable:$true] %s596
          %599 = dma.hbm_to_vmem [thread:$0]  %s595, 16, %s597, %s587
        $region76: #{transformer_encoder.1} parent=23 // pred_fallthru
          _
      $region24: #{transformer_encoder.1} parent=5 // pred_fallthru
        _
      %p600 = scmp.le.s32.totalorder 1, %s28
      %p601 = scmp.lt.s32.totalorder %s28, 5
      %p602 = pnand %p600, %p601
      %p603 = pneg %p602
      // Predicated region
      $region77: #{transformer_encoder.1} parent=5 // pred_check
        _
      $region78: #{transformer_encoder.1} parent=5 // pred_check_branch
        %605 = sbr.rel (%p602) target = $region80
      $region79: #{transformer_encoder.1} parent=5 // pred_region
        %s606 = ssub.s32 %s28, 1
        %s607 = sand.u32 %s313, 1
        %s608 = scalar_lea.sflag [#allocation4], %s607
        %s609 = sand.u32 %s313, 1
        %s610 = scalar_lea.vmem [#allocation3], %s609
        // Predicated region
        $region81: #{transformer_encoder.1} parent=79 // pred_check
          %p611 = pneg %p326
        $region82: #{transformer_encoder.1} parent=79 // pred_check_branch
          %613 = sbr.rel (%p611) target = $region84
        $region83: #{transformer_encoder.1} parent=79 // pred_region
          %615 = dma.done %s608, 16
        $region84: #{transformer_encoder.1} parent=79 // pred_fallthru
          _
        %s616 = sand.u32 %s33, 1
        %s617 = scalar_lea.sflag [#allocation6], %s616
        %s618 = sand.u32 %s339, 1
        %s619 = scalar_lea.vmem [#allocation5], %s618
        // Predicated region
        $region85: #{transformer_encoder.1} parent=79 // pred_check
          %p620 = pneg %p352
        $region86: #{transformer_encoder.1} parent=79 // pred_check_branch
          %622 = sbr.rel (%p620) target = $region88
        $region87: #{transformer_encoder.1} parent=79 // pred_region
          %624 = dma.done %s617, 16
        $region88: #{transformer_encoder.1} parent=79 // pred_fallthru
          _
        %s625 = sand.u32 %s33, 1
        %s626 = scalar_lea.sflag [#allocation6], %s625
        %s627 = sand.u32 %s365, 1
        %s628 = scalar_lea.vmem [#allocation7], %s627
        // Predicated region
        $region89: #{transformer_encoder.1} parent=79 // pred_check
          %p629 = pneg %p378
        $region90: #{transformer_encoder.1} parent=79 // pred_check_branch
          %631 = sbr.rel (%p629) target = $region92
        $region91: #{transformer_encoder.1} parent=79 // pred_region
          %633 = dma.done %s626, 16
        $region92: #{transformer_encoder.1} parent=79 // pred_fallthru
          _
        // Predicated region
        $region93: #{transformer_encoder.1} parent=79 // pred_check
          %p634 = pneg %p420
        $region94: #{transformer_encoder.1} parent=79 // pred_check_branch
          %636 = sbr.rel (%p634) target = $region96
        $region95: #{transformer_encoder.1} parent=79 // pred_region
          %638 = dma.done [#allocation9], 16
        $region96: #{transformer_encoder.1} parent=79 // pred_fallthru
          _
        %p639 = scmp.lt.s32.totalorder %s37, 1
        %s640 = scalar_select %p639, %s37, 1
        %s641 = smul.addr %s640, 8
        %s642 = scalar_lea.vmem %s0, %s641
        %p643 = pneg %p66
        %p644 = pneg %p63
        %p645 = scmp.lt.s32.totalorder %s38, 1
        %s646 = scalar_select %p645, %s38, 1
        %s647 = smul.addr %s646, 4
        %s648 = smul.addr %s647, 4
        %s649 = scalar_lea.vmem %s1, %s648
        %p650 = pneg %p92
        %p651 = pneg %p89
        %p652 = scmp.lt.s32.totalorder %s38, 1
        %s653 = scalar_select %p652, %s38, 1
        %s654 = scalar_lea.vmem %s2, %s653
        %p655 = pneg %p118
        %p656 = pneg %p115
        %p657 = scmp.lt.s32.totalorder %s38, 1
        %s658 = scalar_select %p657, %s38, 1
        %s659 = smul.addr %s658, 4
        %s660 = smul.addr %s659, 4
        %s661 = scalar_lea.vmem %s3, %s660
        %p662 = pneg %p144
        %p663 = pneg %p141
        %p664 = scmp.lt.s32.totalorder %s38, 1
        %s665 = scalar_select %p664, %s38, 1
        %s666 = scalar_lea.vmem %s4, %s665
        %p667 = pneg %p170
        %p668 = pneg %p167
        %p669 = scmp.lt.s32.totalorder %s38, 1
        %s670 = scalar_select %p669, %s38, 1
        %s671 = smul.addr %s670, 4
        %s672 = smul.addr %s671, 4
        %s673 = scalar_lea.vmem %s5, %s672
        %p674 = pneg %p196
        %p675 = pneg %p193
        %p676 = scmp.lt.s32.totalorder %s38, 1
        %s677 = scalar_select %p676, %s38, 1
        %s678 = scalar_lea.vmem %s6, %s677
        %p679 = pneg %p222
        %p680 = pneg %p219
        %p681 = scmp.lt.s32.totalorder %s38, 1
        %s682 = scalar_select %p681, %s38, 1
        %s683 = smul.addr %s682, 8
        %s684 = smul.addr %s683, 4
        %s685 = scalar_lea.vmem %s7, %s684
        %p686 = pneg %p248
        %p687 = pneg %p245
        %p688 = scmp.lt.s32.totalorder %s38, 1
        %s689 = scalar_select %p688, %s38, 1
        %s690 = scalar_lea.vmem %s8, %s689
        %p691 = pneg %p274
        %p692 = pneg %p271
        %p693 = scmp.lt.s32.totalorder %s38, 1
        %s694 = scalar_select %p693, %s38, 1
        %s695 = scalar_lea.vmem %s9, %s694
        %p696 = pneg %p300
        %p697 = pneg %p297
        %s698 = sand.u32 %s313, 1
        %s699 = scalar_lea.sflag [#allocation4], %s698
        %s700 = sand.u32 %s313, 1
        %s701 = scalar_lea.vmem [#allocation3], %s700
        %p702 = pneg %p326
        %p703 = pneg %p323
        %s704 = sand.u32 %s33, 1
        %s705 = scalar_lea.sflag [#allocation6], %s704
        %s706 = sand.u32 %s339, 1
        %s707 = scalar_lea.vmem [#allocation5], %s706
        %p708 = pneg %p352
        %p709 = pneg %p349
        %s710 = sand.u32 %s33, 1
        %s711 = scalar_lea.sflag [#allocation6], %s710
        %s712 = sand.u32 %s365, 1
        %s713 = scalar_lea.vmem [#allocation7], %s712
        %p714 = pneg %p378
        %p715 = pneg %p375
        %p716 = pneg %p399
        %p717 = pneg %p396
        %p718 = pneg %p420
        %p719 = pneg %p417
        %p720 = pneg %p446
        %p721 = pneg %p443
        %p722 = scmp.lt.s32.totalorder %s37, 1
        %s723 = scalar_select %p722, %s37, 1
        %s724 = smul.addr %s723, 8
        %s725 = scalar_lea.vmem %s15, %s724
        %p726 = scmp.lt.s32.totalorder %s37, 1
        %s727 = scalar_select %p726, %s37, 1
        %s728 = smul.addr %s727, 8
        %s729 = scalar_lea.vmem %s0, %s728
        %p730 = scmp.lt.s32.totalorder %s38, 1
        %s731 = scalar_select %p730, %s38, 1
        %s732 = smul.addr %s731, 4
        %s733 = smul.addr %s732, 4
        %s734 = scalar_lea.vmem %s1, %s733
        %p735 = scmp.lt.s32.totalorder %s38, 1
        %s736 = scalar_select %p735, %s38, 1
        %s737 = scalar_lea.vmem %s2, %s736
        %p738 = scmp.lt.s32.totalorder %s38, 1
        %s739 = scalar_select %p738, %s38, 1
        %s740 = smul.addr %s739, 4
        %s741 = smul.addr %s740, 4
        %s742 = scalar_lea.vmem %s3, %s741
        %p743 = scmp.lt.s32.totalorder %s38, 1
        %s744 = scalar_select %p743, %s38, 1
        %s745 = scalar_lea.vmem %s4, %s744
        %p746 = scmp.lt.s32.totalorder %s38, 1
        %s747 = scalar_select %p746, %s38, 1
        %s748 = smul.addr %s747, 4
        %s749 = smul.addr %s748, 4
        %s750 = scalar_lea.vmem %s5, %s749
        %p751 = scmp.lt.s32.totalorder %s38, 1
        %s752 = scalar_select %p751, %s38, 1
        %s753 = scalar_lea.vmem %s6, %s752
        %p754 = scmp.lt.s32.totalorder %s38, 1
        %s755 = scalar_select %p754, %s38, 1
        %s756 = smul.addr %s755, 8
        %s757 = smul.addr %s756, 4
        %s758 = scalar_lea.vmem %s7, %s757
        %p759 = scmp.lt.s32.totalorder %s38, 1
        %s760 = scalar_select %p759, %s38, 1
        %s761 = scalar_lea.vmem %s8, %s760
        %p762 = scmp.lt.s32.totalorder %s38, 1
        %s763 = scalar_select %p762, %s38, 1
        %s764 = scalar_lea.vmem %s9, %s763
        %p765 = scmp.lt.s32.totalorder %s37, 1
        %s766 = scalar_select %p765, %s37, 1
        %s767 = smul.addr %s766, 8
        %s768 = scalar_lea.vmem %s15, %s767
        %p770 = scmp.eq.s32.totalorder %s38, 0
        // Predicated region
        $region97: #{transformer_encoder.1} parent=79 // pred_check
          %p771 = pneg %p770
        $region98: #{transformer_encoder.1} parent=79 // pred_check_branch
          %773 = sbr.rel (%p771) target = $region100
        $region99: #{transformer_encoder.1} parent=79 // pred_region
          %v774 = vld [vmem:[%s729] sm:$0xff]
          %vm775 = vcmask 261120
          %776 = vst.msk [vmem:[#allocation2] sm:$0xff] %vm775, %v774
        $region100: #{transformer_encoder.1} parent=79 // pred_fallthru
          _
        %v777 = vld [vmem:[#allocation2] sm:$0xff]
        %v778 = vld [vmem:[%s764] sm:$0x1]
        %v779 = vld [vmem:[%s610] sm:$0x1]
        %vm780 = vcmask 261120
        %v781 = vsel %vm780, %v777, 0.0
        %782 = vadd.xlane.f32.xlu0 %v781
        %v783 = vpop.xlane.xlu0 %782
        %v784 = vrcp.pop 32.0
        %v785 = vmul.f32 32.0, %v784
        %v786 = vsub.f32 1.0, %v785
        %v787 = vmul.f32 %v784, %v786
        %v788 = vadd.f32 %v784, %v787
        %vm789 = vweird.f32 %v784
        %v790 = vsel %vm789, %v784, %v788
        %v791 = vmul.f32 %v783, %v790
        %v792 = vmul.f32 %v777, %v777
        %v793 = vsel %vm780, %v792, 0.0
        %794 = vadd.xlane.f32.xlu0 %v793
        %v795 = vpop.xlane.xlu0 %794
        %v796 = vmul.f32 %v795, %v790
        %v797 = vmul.f32 %v791, %v791
        %v798 = vsub.f32 %v796, %v797
        %v799 = vmax.f32 %v798, 0.0
        %v800 = vsub.f32 %v777, %v791
        %v801 = vadd.f32 %v799, 1e-05
        %v802 = vrsqrt.pop %v801
        %v803 = vmul.f32 %v802, %v801
        %v804 = vmul.f32 %v803, %v802
        %v805 = vmul.f32 0.5, %v804
        %v806 = vsub.f32 1.5, %v805
        %v807 = vmul.f32 %v802, %v806
        %vm808 = vweird.f32 %v801
        %vm809 = vweird.f32 %v802
        %vm810 = vmor %vm808, %vm809
        %v811 = vsel %vm810, %v802, %v807
        %v812 = vmul.f32 %v800, %v811
        %v814 = vperm.slane %v778, 0
        %v816 = vmul.f32 %v812, %v814
        %v818 = vperm.slane %v779, 0
        %v820 = vadd.f32 %v816, %v818
        %v821 = vpack.c.bf16 %v820, %v820
        %v822 = vld [vmem:[%s734] sm:$0xf]
        %v823 = vld [vmem:[%s734 + $0x4] sm:$0xf]
        %v824 = vld [vmem:[%s734 + $0x8] sm:$0xf]
        %v825 = vld [vmem:[%s734 + $0xc] sm:$0xf]
        %v826 = vld [vmem:[%s737] sm:$0x1]
        %v828 = vperm.slane %v826, 0
        %v834 = vunpack.c.l.b16 %v822
        %v835 = vunpack.c.l.b16 %v823
        %v836 = vunpack.c.l.b16 %v824
        %v837 = vunpack.c.l.b16 %v825
        %v838 = vpack.c.b16 %v835, %v834
        %v839 = vpack.c.b16 %v837, %v836
        %v843 = vsel %vm780, %v821, 0
        %845 = vmatpush.bf16.msra.mxu0 0
        %846 = vmatpush.bf16.msra.mxu0 0
        %847 = vmatpush.bf16.msra.mxu0 0
        %848 = vmatpush.bf16.msra.mxu0 0
        %849 = vmatpush.bf16.msra.mxu0 0
        %850 = vmatpush.bf16.msra.mxu0 0
        %851 = vmatpush.bf16.msra.mxu0 %v839
        %852 = vmatpush.bf16.msra.mxu0 %v838
        %853 = vmatmul.bf16.gmra.mxu0 %v843
        %v854 = vpop.f32.mrf.mxu0
        %v855 = vadd.f32 %v828, %v854
        %v856 = vpop.f32.mrf.mxu0
        %857 = vdwg.mxu0
        %v858 = vpack.c.bf16 %v855, %v855
        %860 = vrot.lane.b32.xlu0 %v858, 104
        %v861 = vpop.permute.xlu0 %860
        %862 = vrot.lane.b32.xlu0 %v858, 80
        %v863 = vpop.permute.xlu0 %862
        %864 = vrot.lane.b32.xlu0 %v858, 56
        %v865 = vpop.permute.xlu0 %864
        %v866 = vunpack.c.l.b16 %v858
        %v867 = vpack.c.b16 %v866, %v866
        %868 = vrot.lane.b32.xlu0 %v867, 120
        %v869 = vpop.permute.xlu0 %868
        %vm870 = vcmask 64512
        %v872 = vsel %vm870, %v858, 0
        %v875 = vsel %vm870, %v869, 0
        %877 = vmatpush.bf16.xpose.msra.mxu0 0
        %878 = vmatpush.bf16.xpose.msra.mxu0 0
        %879 = vmatpush.bf16.xpose.msra.mxu0 0
        %880 = vmatpush.bf16.xpose.msra.mxu0 0
        %881 = vmatpush.bf16.xpose.msra.mxu0 0
        %882 = vmatpush.bf16.xpose.msra.mxu0 0
        %883 = vmatpush.bf16.xpose.msra.mxu0 0
        %884 = vmatpush.bf16.xpose.msra.mxu0 %v875
        %885 = vmatmul.bf16.gmra.mxu0 %v872
        %v886 = vpop.f32.mrf.mxu0
        %v887 = vadd.f32 0.0, %v886
        %v888 = vpop.f32.mrf.mxu0
        %889 = vdwg.mxu0
        %v890 = vunpack.c.l.b16 %v861
        %v891 = vpack.c.b16 %v890, %v890
        %892 = vrot.lane.b32.xlu0 %v891, 120
        %v893 = vpop.permute.xlu0 %892
        %v895 = vsel %vm870, %v861, 0
        %v898 = vsel %vm870, %v893, 0
        %900 = vmatpush.bf16.xpose.msra.mxu0 0
        %901 = vmatpush.bf16.xpose.msra.mxu0 0
        %902 = vmatpush.bf16.xpose.msra.mxu0 0
        %903 = vmatpush.bf16.xpose.msra.mxu0 0
        %904 = vmatpush.bf16.xpose.msra.mxu0 0
        %905 = vmatpush.bf16.xpose.msra.mxu0 0
        %906 = vmatpush.bf16.xpose.msra.mxu0 0
        %907 = vmatpush.bf16.xpose.msra.mxu0 %v898
        %908 = vmatmul.bf16.gmra.mxu0 %v895
        %v909 = vpop.f32.mrf.mxu0
        %v910 = vadd.f32 0.0, %v909
        %v911 = vpop.f32.mrf.mxu0
        %912 = vdwg.mxu0
        %v913 = vunpack.c.l.b16 %v863
        %v914 = vpack.c.b16 %v913, %v913
        %915 = vrot.lane.b32.xlu0 %v914, 120
        %v916 = vpop.permute.xlu0 %915
        %v918 = vsel %vm870, %v863, 0
        %v921 = vsel %vm870, %v916, 0
        %923 = vmatpush.bf16.xpose.msra.mxu0 0
        %924 = vmatpush.bf16.xpose.msra.mxu0 0
        %925 = vmatpush.bf16.xpose.msra.mxu0 0
        %926 = vmatpush.bf16.xpose.msra.mxu0 0
        %927 = vmatpush.bf16.xpose.msra.mxu0 0
        %928 = vmatpush.bf16.xpose.msra.mxu0 0
        %929 = vmatpush.bf16.xpose.msra.mxu0 0
        %930 = vmatpush.bf16.xpose.msra.mxu0 %v921
        %931 = vmatmul.bf16.gmra.mxu0 %v918
        %v932 = vpop.f32.mrf.mxu0
        %v933 = vadd.f32 0.0, %v932
        %v934 = vpop.f32.mrf.mxu0
        %935 = vdwg.mxu0
        %v936 = vunpack.c.l.b16 %v865
        %v937 = vpack.c.b16 %v936, %v936
        %938 = vrot.lane.b32.xlu0 %v937, 120
        %v939 = vpop.permute.xlu0 %938
        %v941 = vsel %vm870, %v865, 0
        %v944 = vsel %vm870, %v939, 0
        %946 = vmatpush.bf16.xpose.msra.mxu0 0
        %947 = vmatpush.bf16.xpose.msra.mxu0 0
        %948 = vmatpush.bf16.xpose.msra.mxu0 0
        %949 = vmatpush.bf16.xpose.msra.mxu0 0
        %950 = vmatpush.bf16.xpose.msra.mxu0 0
        %951 = vmatpush.bf16.xpose.msra.mxu0 0
        %952 = vmatpush.bf16.xpose.msra.mxu0 0
        %953 = vmatpush.bf16.xpose.msra.mxu0 %v944
        %954 = vmatmul.bf16.gmra.mxu0 %v941
        %v955 = vpop.f32.mrf.mxu0
        %v956 = vadd.f32 0.0, %v955
        %v957 = vpop.f32.mrf.mxu0
        %958 = vdwg.mxu0
        %v959 = vsel %vm870, %v887, -inf
        %960 = vmax.xlane.f32.xlu0 %v959
        %v961 = vpop.xlane.xlu0 %960
        %v962 = vsel %vm870, %v910, -inf
        %963 = vmax.xlane.f32.xlu0 %v962
        %v964 = vpop.xlane.xlu0 %963
        %v965 = vsel %vm870, %v933, -inf
        %966 = vmax.xlane.f32.xlu0 %v965
        %v967 = vpop.xlane.xlu0 %966
        %v968 = vsel %vm870, %v956, -inf
        %969 = vmax.xlane.f32.xlu0 %v968
        %v970 = vpop.xlane.xlu0 %969
        %v971 = vsub.f32 %v887, %v961
        %v972 = vsub.f32 %v910, %v964
        %v973 = vsub.f32 %v933, %v967
        %v974 = vsub.f32 %v956, %v970
        %v975 = vmul.f32 %v971, 1.442695
        %v976 = vpow.pop %v975
        %v977 = vmul.f32 %v972, 1.442695
        %v978 = vpow.pop %v977
        %v979 = vmul.f32 %v973, 1.442695
        %v980 = vpow.pop %v979
        %v981 = vmul.f32 %v974, 1.442695
        %v982 = vpow.pop %v981
        %v983 = vsel %vm870, %v976, 0.0
        %984 = vadd.xlane.f32.xlu0 %v983
        %v985 = vpop.xlane.xlu0 %984
        %v986 = vsel %vm870, %v978, 0.0
        %987 = vadd.xlane.f32.xlu0 %v986
        %v988 = vpop.xlane.xlu0 %987
        %v989 = vsel %vm870, %v980, 0.0
        %990 = vadd.xlane.f32.xlu0 %v989
        %v991 = vpop.xlane.xlu0 %990
        %v992 = vsel %vm870, %v982, 0.0
        %993 = vadd.xlane.f32.xlu0 %v992
        %v994 = vpop.xlane.xlu0 %993
        %v995 = vrcp.pop %v985
        %v996 = vrcp.pop %v988
        %v997 = vrcp.pop %v991
        %v998 = vrcp.pop %v994
        %v999 = vmul.f32 %v976, %v995
        %v1000 = vmul.f32 %v978, %v996
        %v1001 = vmul.f32 %v980, %v997
        %v1002 = vmul.f32 %v982, %v998
        %v1003 = vpack.c.bf16 %v999, %v999
        %v1004 = vpack.c.bf16 %v1000, %v1000
        %v1005 = vpack.c.bf16 %v1001, %v1001
        %v1006 = vpack.c.bf16 %v1002, %v1002
        %1007 = vrot.lane.b32.xlu0 %v867, 112
        %v1008 = vpop.permute.xlu0 %1007
        %v1010 = vsel %vm870, %v1003, 0
        %vm1012 = vcmask 1043456
        %v1014 = vsel %vm1012, %v1008, 0
        %1016 = vmatpush.bf16.msra.mxu0 0
        %1017 = vmatpush.bf16.msra.mxu0 0
        %1018 = vmatpush.bf16.msra.mxu0 0
        %1019 = vmatpush.bf16.msra.mxu0 0
        %1020 = vmatpush.bf16.msra.mxu0 0
        %1021 = vmatpush.bf16.msra.mxu0 0
        %1022 = vmatpush.bf16.msra.mxu0 0
        %1023 = vmatpush.bf16.msra.mxu0 %v1014
        %1024 = vmatmul.bf16.gmra.mxu0 %v1010
        %v1025 = vpop.f32.mrf.mxu0
        %v1026 = vadd.f32 0.0, %v1025
        %v1027 = vpop.f32.mrf.mxu0
        %1028 = vdwg.mxu0
        %1029 = vrot.lane.b32.xlu0 %v891, 112
        %v1030 = vpop.permute.xlu0 %1029
        %v1032 = vsel %vm870, %v1004, 0
        %v1035 = vsel %vm1012, %v1030, 0
        %1037 = vmatpush.bf16.msra.mxu0 0
        %1038 = vmatpush.bf16.msra.mxu0 0
        %1039 = vmatpush.bf16.msra.mxu0 0
        %1040 = vmatpush.bf16.msra.mxu0 0
        %1041 = vmatpush.bf16.msra.mxu0 0
        %1042 = vmatpush.bf16.msra.mxu0 0
        %1043 = vmatpush.bf16.msra.mxu0 0
        %1044 = vmatpush.bf16.msra.mxu0 %v1035
        %1045 = vmatmul.bf16.gmra.mxu0 %v1032
        %v1046 = vpop.f32.mrf.mxu0
        %v1047 = vadd.f32 0.0, %v1046
        %v1048 = vpop.f32.mrf.mxu0
        %1049 = vdwg.mxu0
        %1050 = vrot.lane.b32.xlu0 %v914, 112
        %v1051 = vpop.permute.xlu0 %1050
        %v1053 = vsel %vm870, %v1005, 0
        %v1056 = vsel %vm1012, %v1051, 0
        %1058 = vmatpush.bf16.msra.mxu0 0
        %1059 = vmatpush.bf16.msra.mxu0 0
        %1060 = vmatpush.bf16.msra.mxu0 0
        %1061 = vmatpush.bf16.msra.mxu0 0
        %1062 = vmatpush.bf16.msra.mxu0 0
        %1063 = vmatpush.bf16.msra.mxu0 0
        %1064 = vmatpush.bf16.msra.mxu0 0
        %1065 = vmatpush.bf16.msra.mxu0 %v1056
        %1066 = vmatmul.bf16.gmra.mxu0 %v1053
        %v1067 = vpop.f32.mrf.mxu0
        %v1068 = vadd.f32 0.0, %v1067
        %v1069 = vpop.f32.mrf.mxu0
        %1070 = vdwg.mxu0
        %1071 = vrot.lane.b32.xlu0 %v937, 112
        %v1072 = vpop.permute.xlu0 %1071
        %v1074 = vsel %vm870, %v1006, 0
        %v1077 = vsel %vm1012, %v1072, 0
        %1079 = vmatpush.bf16.msra.mxu0 0
        %1080 = vmatpush.bf16.msra.mxu0 0
        %1081 = vmatpush.bf16.msra.mxu0 0
        %1082 = vmatpush.bf16.msra.mxu0 0
        %1083 = vmatpush.bf16.msra.mxu0 0
        %1084 = vmatpush.bf16.msra.mxu0 0
        %1085 = vmatpush.bf16.msra.mxu0 0
        %1086 = vmatpush.bf16.msra.mxu0 %v1077
        %1087 = vmatmul.bf16.gmra.mxu0 %v1074
        %v1088 = vpop.f32.mrf.mxu0
        %v1089 = vadd.f32 0.0, %v1088
        %v1090 = vpop.f32.mrf.mxu0
        %1091 = vdwg.mxu0
        %v1092 = vpack.c.bf16 %v1026, %v1026
        %v1093 = vpack.c.bf16 %v1047, %v1047
        %v1094 = vpack.c.bf16 %v1068, %v1068
        %v1095 = vpack.c.bf16 %v1089, %v1089
        %v1097 = vunpack.c.l.b16 %v1093
        %v1098 = vpack.c.b16 %v1097, %v1097
        %1099 = vrot.lane.b32.xlu0 %v1098, 8
        %v1100 = vpop.permute.xlu0 %1099
        %v1102 = vunpack.c.l.b16 %v1094
        %v1103 = vpack.c.b16 %v1102, %v1102
        %1104 = vrot.lane.b32.xlu0 %v1103, 16
        %v1105 = vpop.permute.xlu0 %1104
        %v1107 = vunpack.c.l.b16 %v1095
        %v1108 = vpack.c.b16 %v1107, %v1107
        %1109 = vrot.lane.b32.xlu0 %v1108, 24
        %v1110 = vpop.permute.xlu0 %1109
        %v1113 = vsel %vm870, %v1092, %v1100
        %vm1114 = vcmask 130048
        %v1116 = vsel %vm1114, %v1113, %v1105
        %vm1117 = vcmask 195584
        %v1119 = vsel %vm1117, %v1116, %v1110
        %v1120 = vld [vmem:[%s742] sm:$0xf]
        %v1121 = vld [vmem:[%s742 + $0x4] sm:$0xf]
        %v1122 = vld [vmem:[%s742 + $0x8] sm:$0xf]
        %v1123 = vld [vmem:[%s742 + $0xc] sm:$0xf]
        %v1124 = vld [vmem:[%s745] sm:$0x1]
        %v1126 = vperm.slane %v1124, 0
        %v1132 = vunpack.c.l.b16 %v1120
        %v1133 = vunpack.c.l.b16 %v1121
        %v1134 = vunpack.c.l.b16 %v1122
        %v1135 = vunpack.c.l.b16 %v1123
        %v1136 = vpack.c.b16 %v1133, %v1132
        %v1137 = vpack.c.b16 %v1135, %v1134
        %v1140 = vsel %vm780, %v1119, 0
        %1142 = vmatpush.bf16.msra.mxu0 0
        %1143 = vmatpush.bf16.msra.mxu0 0
        %1144 = vmatpush.bf16.msra.mxu0 0
        %1145 = vmatpush.bf16.msra.mxu0 0
        %1146 = vmatpush.bf16.msra.mxu0 0
        %1147 = vmatpush.bf16.msra.mxu0 0
        %1148 = vmatpush.bf16.msra.mxu0 %v1137
        %1149 = vmatpush.bf16.msra.mxu0 %v1136
        %1150 = vmatmul.bf16.gmra.mxu0 %v1140
        %v1151 = vpop.f32.mrf.mxu0
        %v1152 = vadd.f32 %v1126, %v1151
        %v1153 = vpop.f32.mrf.mxu0
        %1154 = vdwg.mxu0
        %v1155 = vadd.f32 %v777, %v1152
        %v1156 = vld [vmem:[%s619] sm:$0x1]
        %v1157 = vld [vmem:[%s628] sm:$0x1]
        %v1158 = vsel %vm780, %v1155, 0.0
        %1159 = vadd.xlane.f32.xlu0 %v1158
        %v1160 = vpop.xlane.xlu0 %1159
        %v1161 = vmul.f32 %v1160, %v790
        %v1162 = vmul.f32 %v1155, %v1155
        %v1163 = vsel %vm780, %v1162, 0.0
        %1164 = vadd.xlane.f32.xlu0 %v1163
        %v1165 = vpop.xlane.xlu0 %1164
        %v1166 = vmul.f32 %v1165, %v790
        %v1167 = vmul.f32 %v1161, %v1161
        %v1168 = vsub.f32 %v1166, %v1167
        %v1169 = vmax.f32 %v1168, 0.0
        %v1170 = vsub.f32 %v1155, %v1161
        %v1171 = vadd.f32 %v1169, 1e-05
        %v1172 = vrsqrt.pop %v1171
        %v1173 = vmul.f32 %v1172, %v1171
        %v1174 = vmul.f32 %v1173, %v1172
        %v1175 = vmul.f32 0.5, %v1174
        %v1176 = vsub.f32 1.5, %v1175
        %v1177 = vmul.f32 %v1172, %v1176
        %vm1178 = vweird.f32 %v1171
        %vm1179 = vweird.f32 %v1172
        %vm1180 = vmor %vm1178, %vm1179
        %v1181 = vsel %vm1180, %v1172, %v1177
        %v1182 = vmul.f32 %v1170, %v1181
        %v1184 = vperm.slane %v1156, 0
        %v1186 = vmul.f32 %v1182, %v1184
        %v1188 = vperm.slane %v1157, 0
        %v1190 = vadd.f32 %v1186, %v1188
        %v1191 = vpack.c.bf16 %v1190, %v1190
        %v1192 = vld [vmem:[%s750] sm:$0xf]
        %v1193 = vld [vmem:[%s750 + $0x4] sm:$0xf]
        %v1194 = vld [vmem:[%s750 + $0x8] sm:$0xf]
        %v1195 = vld [vmem:[%s750 + $0xc] sm:$0xf]
        %v1196 = vld [vmem:[%s753] sm:$0x1]
        %v1198 = vperm.slane %v1196, 0
        %v1204 = vunpack.c.l.b16 %v1192
        %v1205 = vunpack.c.l.b16 %v1193
        %v1206 = vunpack.c.l.b16 %v1194
        %v1207 = vunpack.c.l.b16 %v1195
        %v1208 = vpack.c.b16 %v1205, %v1204
        %v1209 = vpack.c.b16 %v1207, %v1206
        %v1213 = vsel %vm780, %v1191, 0
        %1215 = vmatpush.bf16.msra.mxu0 0
        %1216 = vmatpush.bf16.msra.mxu0 0
        %1217 = vmatpush.bf16.msra.mxu0 0
        %1218 = vmatpush.bf16.msra.mxu0 0
        %1219 = vmatpush.bf16.msra.mxu0 0
        %1220 = vmatpush.bf16.msra.mxu0 0
        %1221 = vmatpush.bf16.msra.mxu0 %v1209
        %1222 = vmatpush.bf16.msra.mxu0 %v1208
        %1223 = vmatmul.bf16.gmra.mxu0 %v1213
        %v1224 = vpop.f32.mrf.mxu0
        %v1225 = vadd.f32 %v1198, %v1224
        %v1226 = vpop.f32.mrf.mxu0
        %1227 = vdwg.mxu0
        %v1228 = vmax.f32 %v1225, 0.0
        %v1229 = vpack.c.bf16 %v1228, %v1228
        %v1230 = vld [vmem:[%s758] sm:$0xf]
        %v1231 = vld [vmem:[%s758 + $0x4] sm:$0xf]
        %v1232 = vld [vmem:[%s758 + $0x8] sm:$0xf]
        %v1233 = vld [vmem:[%s758 + $0xc] sm:$0xf]
        %v1234 = vld [vmem:[%s758 + $0x10] sm:$0xf]
        %v1235 = vld [vmem:[%s758 + $0x14] sm:$0xf]
        %v1236 = vld [vmem:[%s758 + $0x18] sm:$0xf]
        %v1237 = vld [vmem:[%s758 + $0x1c] sm:$0xf]
        %v1238 = vld [vmem:[%s761] sm:$0x1]
        %v1240 = vperm.slane %v1238, 0
        %v1250 = vunpack.c.l.b16 %v1230
        %v1251 = vunpack.c.l.b16 %v1231
        %v1252 = vunpack.c.l.b16 %v1232
        %v1253 = vunpack.c.l.b16 %v1233
        %v1254 = vunpack.c.l.b16 %v1234
        %v1255 = vunpack.c.l.b16 %v1235
        %v1256 = vunpack.c.l.b16 %v1236
        %v1257 = vunpack.c.l.b16 %v1237
        %v1258 = vpack.c.b16 %v1251, %v1250
        %v1259 = vpack.c.b16 %v1253, %v1252
        %v1260 = vpack.c.b16 %v1255, %v1254
        %v1261 = vpack.c.b16 %v1257, %v1256
        %vm1266 = vcmask 523264
        %v1268 = vsel %vm1266, %v1229, 0
        %1270 = vmatpush.bf16.msra.mxu0 0
        %1271 = vmatpush.bf16.msra.mxu0 0
        %1272 = vmatpush.bf16.msra.mxu0 0
        %1273 = vmatpush.bf16.msra.mxu0 0
        %1274 = vmatpush.bf16.msra.mxu0 %v1261
        %1275 = vmatpush.bf16.msra.mxu0 %v1260
        %1276 = vmatpush.bf16.msra.mxu0 %v1259
        %1277 = vmatpush.bf16.msra.mxu0 %v1258
        %1278 = vmatmul.bf16.gmra.mxu0 %v1268
        %v1279 = vpop.f32.mrf.mxu0
        %v1280 = vadd.f32 %v1240, %v1279
        %v1281 = vpop.f32.mrf.mxu0
        %1282 = vdwg.mxu0
        %v1283 = vadd.f32 %v1155, %v1280
        %1284 = vst.msk [vmem:[#allocation2] sm:$0xff] %vm780, %v1283
        %p1285 = scmp.eq.s32.totalorder %s38, 1
        // Predicated region
        $region101: #{transformer_encoder.1} parent=79 // pred_check
          %p1286 = pneg %p1285
        $region102: #{transformer_encoder.1} parent=79 // pred_check_branch
          %1288 = sbr.rel (%p1286) target = $region104
        $region103: #{transformer_encoder.1} parent=79 // pred_region
          %v1289 = vld [vmem:[%s13] sm:$0x1]
          %v1290 = vld [vmem:[#allocation8] sm:$0x1]
          %v1291 = vsel %vm780, %v1283, 0.0
          %1292 = vadd.xlane.f32.xlu0 %v1291
          %v1293 = vpop.xlane.xlu0 %1292
          %v1294 = vmul.f32 %v1293, %v790
          %v1295 = vmul.f32 %v1283, %v1283
          %v1296 = vsel %vm780, %v1295, 0.0
          %1297 = vadd.xlane.f32.xlu0 %v1296
          %v1298 = vpop.xlane.xlu0 %1297
          %v1299 = vmul.f32 %v1298, %v790
          %v1300 = vmul.f32 %v1294, %v1294
          %v1301 = vsub.f32 %v1299, %v1300
          %v1302 = vmax.f32 %v1301, 0.0
          %v1303 = vsub.f32 %v1283, %v1294
          %v1304 = vadd.f32 %v1302, 1e-05
          %v1305 = vrsqrt.pop %v1304
          %v1306 = vmul.f32 %v1305, %v1304
          %v1307 = vmul.f32 %v1306, %v1305
          %v1308 = vmul.f32 0.5, %v1307
          %v1309 = vsub.f32 1.5, %v1308
          %v1310 = vmul.f32 %v1305, %v1309
          %vm1311 = vweird.f32 %v1304
          %vm1312 = vweird.f32 %v1305
          %vm1313 = vmor %vm1311, %vm1312
          %v1314 = vsel %vm1313, %v1305, %v1310
          %v1315 = vmul.f32 %v1303, %v1314
          %v1317 = vperm.slane %v1289, 0
          %v1319 = vmul.f32 %v1315, %v1317
          %v1321 = vperm.slane %v1290, 0
          %v1323 = vadd.f32 %v1319, %v1321
          %1324 = vst.msk [vmem:[%s768] sm:$0xff] %vm780, %v1323
        $region104: #{transformer_encoder.1} parent=79 // pred_fallthru
          _
        %p1325 = scmp.lt.s32.totalorder %s37, 1
        %s1326 = scalar_select %p1325, %s37, 1
        %s1327 = smul.addr %s1326, 8
        %s1328 = scalar_lea.vmem %s15, %s1327
        // Predicated region
        $region105: #{transformer_encoder.1} parent=79 // pred_check
          %p1329 = pneg %p443
        $region106: #{transformer_encoder.1} parent=79 // pred_check_branch
          %1331 = sbr.rel (%p1329) target = $region108
        $region107: #{transformer_encoder.1} parent=79 // pred_region
          _
        $region108: #{transformer_encoder.1} parent=79 // pred_fallthru
          _
      $region80: #{transformer_encoder.1} parent=5 // pred_fallthru
        _
      %p1332 = scmp.le.s32.totalorder 2, %s28
      // Predicated region
      $region109: #{transformer_encoder.1} parent=5 // pred_check
        %p1333 = pneg %p1332
      $region110: #{transformer_encoder.1} parent=5 // pred_check_branch
        %1335 = sbr.rel (%p1333) target = $region112
      $region111: #{transformer_encoder.1} parent=5 // pred_region
        %s1336 = ssub.s32 %s28, 2
        // Predicated region
        $region113: #{transformer_encoder.1} parent=111 // pred_check
          %p1337 = pneg %p449
        $region114: #{transformer_encoder.1} parent=111 // pred_check_branch
          %1339 = sbr.rel (%p1337) target = $region116
        $region115: #{transformer_encoder.1} parent=111 // pred_region
          %p1340 = scmp.lt.s32.totalorder %s39, 1
          %s1341 = scalar_select %p1340, %s39, 1
          %s1342 = smul.addr %s1341, 8
          %s1343 = scalar_lea.vmem %s15, %s1342
        $region116: #{transformer_encoder.1} parent=111 // pred_fallthru
          _
      $region112: #{transformer_encoder.1} parent=5 // pred_fallthru
        _
    $region6: #{transformer_encoder.1} parent=1 // loop_footer
      %s32 = sadd.s32 1, %s28
    $region7: #{transformer_encoder.1} parent=1 // loop_footer_branch
      %27 = sbr.rel target = $region3
    $region8: #{transformer_encoder.1} parent=1 // loop_exit
      _
    %1344 = vsyncpa [#allocation4], 1
    %s1345 = scalar_lea.sflag [#allocation4], 1
    %1346 = vsyncpa %s1345, 1
    %1347 = vsyncpa [#allocation6], 1
    %s1348 = scalar_lea.sflag [#allocation6], 1
    %1349 = vsyncpa %s1348, 1
    %1350 = vsyncpa [#allocation9], 1

</llo_original>
